<compile_context>
chip_gen: v6e
topology: v6e:2x2x1
jax: 0.10.0
libtpu: 0.0.40
codegen_flags: <defaults>
</compile_context>

<pallas_src>
import functools

import jax
import jax.numpy as jnp
from jax.experimental import pallas as pl
from jax.experimental.pallas import tpu as pltpu


# ---------------------------------------------------------------------------
# Fused multi-head kernel
# ---------------------------------------------------------------------------
def _fused_heads_kernel(*refs, layer_counts):
    """All heads' layer chains fused; intermediates stay on-chip.

    refs layout (L = sum(layer_counts), H = len(layer_counts)):
      refs[0]                 : patches block (1, TM, 9*Cin)   bf16
      refs[1 : 1+2L]          : (w, b) per layer, heads concatenated in order
                                 w: (K, C) bf16,  b: (1, C) f32
      refs[1+2L : 1+2L+H]     : per-head output block (1, Cout_h, TM)  f32
    """
    num_heads = len(layer_counts)
    total_layers = sum(layer_counts)
    patches_ref = refs[0]
    wb_refs = refs[1:1 + 2 * total_layers]
    out_refs = refs[1 + 2 * total_layers:1 + 2 * total_layers + num_heads]

    # Load the shared im2col block once; every head reuses it (no re-read).
    x = patches_ref[0]  # (TM, 9*Cin) bf16

    li_global = 0
    for h, n_layers in enumerate(layer_counts):
        y = x
        for li in range(n_layers):
            w = wb_refs[2 * li_global][...]        # (K, C)  bf16
            b = wb_refs[2 * li_global + 1][...]    # (1, C)  f32
            li_global += 1
            acc = jnp.dot(y, w, preferred_element_type=jnp.float32) + b
            if li < n_layers - 1:
                # hidden layer: ReLU, back to bf16 for the next MXU matmul
                y = jnp.maximum(acc, 0.0).astype(jnp.bfloat16)
            else:
                # final layer: lane-dense store (Cout, TM), TM >= 128 on lanes
                out_refs[h][0] = acc.T.astype(out_refs[h].dtype)


# ---------------------------------------------------------------------------
# Wrappers (im2col + pallas_call plumbing stay in plain JAX)
# ---------------------------------------------------------------------------
def _im2col_3x3(x_nhwc):
    """(N, H, W, Cin) -> (N, H*W, 9*Cin) patches for a 3x3, pad=1 conv."""
    N, H, W, Cin = x_nhwc.shape
    xp = jnp.pad(x_nhwc, ((0, 0), (1, 1), (1, 1), (0, 0)))
    taps = [xp[:, dy:dy + H, dx:dx + W, :] for dy in range(3) for dx in range(3)]
    patches = jnp.concatenate(taps, axis=-1)       # (N, H, W, 9*Cin)
    return patches.reshape(N, H * W, 9 * Cin)


def _pick_tile_m(m):
    for t in (2048, 1024, 512, 256, 128):
        if m % t == 0:
            return t
    return m  # tiny spatial: single full block


def fused_heads(patches, head_params, H, W):
    """Run all heads on one stack's features with a single pallas_call.

    patches:     (N, M, 9*Cin) bf16 im2col features (M = H*W).
    head_params: dict head -> [(w, b), ...]   (w bf16 (K,C), b f32 (1,C)).
    Returns dict head -> (N, Cout, H, W) f32 (NCHW, no extra transpose).
    """
    N, M, K0 = patches.shape
    TM = _pick_tile_m(M)
    grid = (N, M // TM)

    heads = list(head_params.keys())
    layer_counts = tuple(len(head_params[h]) for h in heads)

    in_specs = [pl.BlockSpec((1, TM, K0), lambda n, m: (n, m, 0))]
    args = [patches]
    for h in heads:
        for (w, b) in head_params[h]:
            in_specs.append(pl.BlockSpec(w.shape, lambda n, m: (0, 0)))
            in_specs.append(pl.BlockSpec(b.shape, lambda n, m: (0, 0)))
            args.append(w)
            args.append(b)

    out_shapes = []
    out_specs = []
    for h in heads:
        cout = head_params[h][-1][0].shape[-1]
        out_shapes.append(jax.ShapeDtypeStruct((N, cout, M), jnp.float32))
        out_specs.append(pl.BlockSpec((1, cout, TM), lambda n, m: (n, 0, m)))

    outs = pl.pallas_call(
        functools.partial(_fused_heads_kernel, layer_counts=layer_counts),
        out_shape=tuple(out_shapes),
        grid=grid,
        in_specs=in_specs,
        out_specs=tuple(out_specs),
        compiler_params=pltpu.CompilerParams(
            dimension_semantics=("parallel", "parallel")),
    )(*args)

    return {h: outs[i].reshape(N, outs[i].shape[1], H, W)
            for i, h in enumerate(heads)}


# ---------------------------------------------------------------------------
# Model
# ---------------------------------------------------------------------------
def _init_conv(key, kh, kw, cin, cout):
    """Deterministic (fan-in scaled) conv weight/bias init, HWIO layout."""
    kw_key, kb_key = jax.random.split(key)
    fan_in = kh * kw * cin
    scale = 1.0 / jnp.sqrt(jnp.float32(fan_in))
    w = jax.random.normal(kw_key, (kh, kw, cin, cout), jnp.float32) * scale
    b = jax.random.normal(kb_key, (cout,), jnp.float32) * scale
    return w, b


class PallasBaseModelPoly:
    """JAX/Pallas port of BaseModelPoly (forward pass only)."""

    def __init__(self, heads, head_convs, num_stacks, last_channel, key,
                 head_kernel=3):
        assert head_kernel == 3, "only the default 3x3 head kernel is built"
        self.heads = dict(heads)
        self.num_stacks = num_stacks
        self.last_channel = last_channel
        # params[stack][head] -> list of (w_bf16 (K,C), b_f32 (1,C))
        self.params = []
        for _ in range(num_stacks):
            stack_params = {}
            for head in self.heads:
                out_channels = self.heads[head]
                conv_dims = head_convs[head]
                layers = []
                # ConvBlock: 3x3 conv + ReLU (no BN), stored as im2col weight.
                key, sub = jax.random.split(key)
                w, b = _init_conv(sub, 3, 3, last_channel, conv_dims[0])
                layers.append(
                    (w.reshape(9 * last_channel, conv_dims[0]).astype(jnp.bfloat16),
                     b.reshape(1, -1)))
                # intermediate 1x1 convs + ReLU
                for i in range(1, len(conv_dims)):
                    key, sub = jax.random.split(key)
                    w, b = _init_conv(sub, 1, 1, conv_dims[i - 1], conv_dims[i])
                    layers.append((w[0, 0].astype(jnp.bfloat16), b.reshape(1, -1)))
                # final 1x1 conv (no activation)
                key, sub = jax.random.split(key)
                w, b = _init_conv(sub, 1, 1, conv_dims[-1], out_channels)
                if "hm" in head:
                    b = jnp.full_like(b, -2.19)  # heat[-1].bias.data.fill_(-2.19)
                layers.append((w[0, 0].astype(jnp.bfloat16), b.reshape(1, -1)))
                stack_params[head] = layers
            self.params.append(stack_params)

    def img2feats(self, x_nchw):
        # Identity backbone: input already has last_channel channels.
        # TODO(synk): abstract in the reference; supply a real backbone here.
        x_nhwc = jnp.transpose(x_nchw, (0, 2, 3, 1)).astype(jnp.bfloat16)
        return [x_nhwc for _ in range(self.num_stacks)]

    def forward(self, x, pre_img=None, pre_hm=None):
        if pre_hm is not None or pre_img is not None:
            raise NotImplementedError("imgpre2feats not implemented")
        feats = self.img2feats(x)
        N, _, H, W = x.shape
        out = []
        # Identity backbone => identical features each stack: build im2col ONCE
        # and reuse for every stack and every head (hoisted pad + patches).
        patches = _im2col_3x3(feats[0])
        for s in range(self.num_stacks):
            z = fused_heads(patches, self.params[s], H, W)  # already NCHW
            out.append(z)
        return out


# ---------------------------------------------------------------------------
if __name__ == "__main__":
    key = jax.random.PRNGKey(0)
    k_in, k_model = jax.random.split(key)

    # Small shapes consistent with the module.
    N, last_channel, H, W = 2, 32, 16, 16
    heads = {"hm": 4, "wh": 2}
    head_convs = {"hm": [32], "wh": [32, 16]}
    num_stacks = 1

    x = jax.random.normal(k_in, (N, last_channel, H, W), jnp.float32)  # NCHW

    model = PallasBaseModelPoly(heads, head_convs, num_stacks,
                                last_channel, k_model)
    out = model.forward(x)

    # Block on every output.
    for s in range(num_stacks):
        for head in heads:
            jax.block_until_ready(out[s][head])
            assert out[s][head].shape == (N, heads[head], H, W)

    print("KERNEL_OK")
</pallas_src>

<mosaic_0001>
module attributes {stable_mosaic.version = 11 : i64} {
  func.func @_fused_heads_kernel(%arg0: i32, %arg1: i32, %arg2: memref<1x256x288xbf16, #tpu.memory_space<vmem>>, %arg3: memref<288x32xbf16, #tpu.memory_space<vmem>>, %arg4: memref<1x32xf32, #tpu.memory_space<vmem>>, %arg5: memref<32x4xbf16, #tpu.memory_space<vmem>>, %arg6: memref<1x4xf32, #tpu.memory_space<vmem>>, %arg7: memref<288x32xbf16, #tpu.memory_space<vmem>>, %arg8: memref<1x32xf32, #tpu.memory_space<vmem>>, %arg9: memref<32x16xbf16, #tpu.memory_space<vmem>>, %arg10: memref<1x16xf32, #tpu.memory_space<vmem>>, %arg11: memref<16x2xbf16, #tpu.memory_space<vmem>>, %arg12: memref<1x2xf32, #tpu.memory_space<vmem>>, %arg13: memref<1x4x256xf32, #tpu.memory_space<vmem>>, %arg14: memref<1x2x256xf32, #tpu.memory_space<vmem>>) attributes {dimension_semantics = [#tpu.dimension_semantics<parallel>, #tpu.dimension_semantics<parallel>], iteration_bounds = array<i64: 2, 1>, scalar_prefetch = 0 : i64, scratch_operands = 0 : i64, tpu.core_type = #tpu.core_type<tc>, window_params = [{transform_indices = @transform_0, window_bounds = array<i64: 1, 256, 288>}, {pipeline_mode = #tpu.pipeline_mode<synchronous>, transform_indices = @transform_1, window_bounds = array<i64: 288, 32>}, {pipeline_mode = #tpu.pipeline_mode<synchronous>, transform_indices = @transform_2, window_bounds = array<i64: 1, 32>}, {pipeline_mode = #tpu.pipeline_mode<synchronous>, transform_indices = @transform_3, window_bounds = array<i64: 32, 4>}, {pipeline_mode = #tpu.pipeline_mode<synchronous>, transform_indices = @transform_4, window_bounds = array<i64: 1, 4>}, {pipeline_mode = #tpu.pipeline_mode<synchronous>, transform_indices = @transform_5, window_bounds = array<i64: 288, 32>}, {pipeline_mode = #tpu.pipeline_mode<synchronous>, transform_indices = @transform_6, window_bounds = array<i64: 1, 32>}, {pipeline_mode = #tpu.pipeline_mode<synchronous>, transform_indices = @transform_7, window_bounds = array<i64: 32, 16>}, {pipeline_mode = #tpu.pipeline_mode<synchronous>, transform_indices = @transform_8, window_bounds = array<i64: 1, 16>}, {pipeline_mode = #tpu.pipeline_mode<synchronous>, transform_indices = @transform_9, window_bounds = array<i64: 16, 2>}, {pipeline_mode = #tpu.pipeline_mode<synchronous>, transform_indices = @transform_10, window_bounds = array<i64: 1, 2>}, {transform_indices = @transform_11, window_bounds = array<i64: 1, 4, 256>}, {transform_indices = @transform_12, window_bounds = array<i64: 1, 2, 256>}]} {
    %c0 = arith.constant 0 : index
    %c0_0 = arith.constant 0 : index
    %c0_1 = arith.constant 0 : index
    %0 = vector.load %arg2[%c0, %c0_0, %c0_1] : memref<1x256x288xbf16, #tpu.memory_space<vmem>>, vector<1x256x288xbf16>
    %1 = vector.shape_cast %0 : vector<1x256x288xbf16> to vector<256x288xbf16>
    %c0_2 = arith.constant 0 : index
    %c0_3 = arith.constant 0 : index
    %2 = vector.load %arg3[%c0_2, %c0_3] : memref<288x32xbf16, #tpu.memory_space<vmem>>, vector<288x32xbf16>
    %c0_4 = arith.constant 0 : index
    %c0_5 = arith.constant 0 : index
    %3 = vector.load %arg4[%c0_4, %c0_5] : memref<1x32xf32, #tpu.memory_space<vmem>>, vector<1x32xf32>
    %cst = arith.constant dense<0.000000e+00> : vector<256x32xf32>
    %4 = tpu.matmul %1, %2, %cst {dimension_numbers = #tpu.dot_dimension_numbers<[1], [0], [0], [1], [0, 0, 1, 1], [], []>} : vector<256x288xbf16>, vector<288x32xbf16>, vector<256x32xf32> -> vector<256x32xf32>
    %5 = vector.broadcast %3 : vector<1x32xf32> to vector<256x32xf32>
    %6 = arith.addf %4, %5 : vector<256x32xf32>
    %cst_6 = arith.constant 0.000000e+00 : f32
    %7 = vector.broadcast %cst_6 : f32 to vector<256x32xf32>
    %8 = arith.maximumf %6, %7 : vector<256x32xf32>
    %9 = arith.truncf %8 : vector<256x32xf32> to vector<256x32xbf16>
    %c0_7 = arith.constant 0 : index
    %c0_8 = arith.constant 0 : index
    %10 = vector.load %arg5[%c0_7, %c0_8] : memref<32x4xbf16, #tpu.memory_space<vmem>>, vector<32x4xbf16>
    %c0_9 = arith.constant 0 : index
    %c0_10 = arith.constant 0 : index
    %11 = vector.load %arg6[%c0_9, %c0_10] : memref<1x4xf32, #tpu.memory_space<vmem>>, vector<1x4xf32>
    %cst_11 = arith.constant dense<0.000000e+00> : vector<256x4xf32>
    %12 = tpu.matmul %9, %10, %cst_11 {dimension_numbers = #tpu.dot_dimension_numbers<[1], [0], [0], [1], [0, 0, 1, 1], [], []>} : vector<256x32xbf16>, vector<32x4xbf16>, vector<256x4xf32> -> vector<256x4xf32>
    %13 = vector.broadcast %11 : vector<1x4xf32> to vector<256x4xf32>
    %14 = arith.addf %12, %13 : vector<256x4xf32>
    %15 = tpu.transpose %14, [1, 0] : vector<256x4xf32> -> vector<4x256xf32>
    %c0_12 = arith.constant 0 : index
    %c0_13 = arith.constant 0 : index
    %c0_14 = arith.constant 0 : index
    %16 = vector.load %arg13[%c0_12, %c0_13, %c0_14] : memref<1x4x256xf32, #tpu.memory_space<vmem>>, vector<1x4x256xf32>
    %17 = vector.shape_cast %16 : vector<1x4x256xf32> to vector<4x256xf32>
    %18 = vector.shape_cast %15 : vector<4x256xf32> to vector<1x4x256xf32>
    tpu.vector_store %arg13[%c0_12, %c0_13, %c0_14], %18 {strides = array<i32>} : memref<1x4x256xf32, #tpu.memory_space<vmem>>, vector<1x4x256xf32>,
    %c0_15 = arith.constant 0 : index
    %c0_16 = arith.constant 0 : index
    %19 = vector.load %arg7[%c0_15, %c0_16] : memref<288x32xbf16, #tpu.memory_space<vmem>>, vector<288x32xbf16>
    %c0_17 = arith.constant 0 : index
    %c0_18 = arith.constant 0 : index
    %20 = vector.load %arg8[%c0_17, %c0_18] : memref<1x32xf32, #tpu.memory_space<vmem>>, vector<1x32xf32>
    %cst_19 = arith.constant dense<0.000000e+00> : vector<256x32xf32>
    %21 = tpu.matmul %1, %19, %cst_19 {dimension_numbers = #tpu.dot_dimension_numbers<[1], [0], [0], [1], [0, 0, 1, 1], [], []>} : vector<256x288xbf16>, vector<288x32xbf16>, vector<256x32xf32> -> vector<256x32xf32>
    %22 = vector.broadcast %20 : vector<1x32xf32> to vector<256x32xf32>
    %23 = arith.addf %21, %22 : vector<256x32xf32>
    %cst_20 = arith.constant 0.000000e+00 : f32
    %24 = vector.broadcast %cst_20 : f32 to vector<256x32xf32>
    %25 = arith.maximumf %23, %24 : vector<256x32xf32>
    %26 = arith.truncf %25 : vector<256x32xf32> to vector<256x32xbf16>
    %c0_21 = arith.constant 0 : index
    %c0_22 = arith.constant 0 : index
    %27 = vector.load %arg9[%c0_21, %c0_22] : memref<32x16xbf16, #tpu.memory_space<vmem>>, vector<32x16xbf16>
    %c0_23 = arith.constant 0 : index
    %c0_24 = arith.constant 0 : index
    %28 = vector.load %arg10[%c0_23, %c0_24] : memref<1x16xf32, #tpu.memory_space<vmem>>, vector<1x16xf32>
    %cst_25 = arith.constant dense<0.000000e+00> : vector<256x16xf32>
    %29 = tpu.matmul %26, %27, %cst_25 {dimension_numbers = #tpu.dot_dimension_numbers<[1], [0], [0], [1], [0, 0, 1, 1], [], []>} : vector<256x32xbf16>, vector<32x16xbf16>, vector<256x16xf32> -> vector<256x16xf32>
    %30 = vector.broadcast %28 : vector<1x16xf32> to vector<256x16xf32>
    %31 = arith.addf %29, %30 : vector<256x16xf32>
    %cst_26 = arith.constant 0.000000e+00 : f32
    %32 = vector.broadcast %cst_26 : f32 to vector<256x16xf32>
    %33 = arith.maximumf %31, %32 : vector<256x16xf32>
    %34 = arith.truncf %33 : vector<256x16xf32> to vector<256x16xbf16>
    %c0_27 = arith.constant 0 : index
    %c0_28 = arith.constant 0 : index
    %35 = vector.load %arg11[%c0_27, %c0_28] : memref<16x2xbf16, #tpu.memory_space<vmem>>, vector<16x2xbf16>
    %c0_29 = arith.constant 0 : index
    %c0_30 = arith.constant 0 : index
    %36 = vector.load %arg12[%c0_29, %c0_30] : memref<1x2xf32, #tpu.memory_space<vmem>>, vector<1x2xf32>
    %cst_31 = arith.constant dense<0.000000e+00> : vector<256x2xf32>
    %37 = tpu.matmul %34, %35, %cst_31 {dimension_numbers = #tpu.dot_dimension_numbers<[1], [0], [0], [1], [0, 0, 1, 1], [], []>} : vector<256x16xbf16>, vector<16x2xbf16>, vector<256x2xf32> -> vector<256x2xf32>
    %38 = vector.broadcast %36 : vector<1x2xf32> to vector<256x2xf32>
    %39 = arith.addf %37, %38 : vector<256x2xf32>
    %40 = tpu.transpose %39, [1, 0] : vector<256x2xf32> -> vector<2x256xf32>
    %c0_32 = arith.constant 0 : index
    %c0_33 = arith.constant 0 : index
    %c0_34 = arith.constant 0 : index
    %41 = vector.load %arg14[%c0_32, %c0_33, %c0_34] : memref<1x2x256xf32, #tpu.memory_space<vmem>>, vector<1x2x256xf32>
    %42 = vector.shape_cast %41 : vector<1x2x256xf32> to vector<2x256xf32>
    %43 = vector.shape_cast %40 : vector<2x256xf32> to vector<1x2x256xf32>
    tpu.vector_store %arg14[%c0_32, %c0_33, %c0_34], %43 {strides = array<i32>} : memref<1x2x256xf32, #tpu.memory_space<vmem>>, vector<1x2x256xf32>,
    return
  }
  func.func @transform_0(%arg0: i32, %arg1: i32) -> (i32, i32, i32) {
    %c0_i32 = arith.constant 0 : i32
    %c0_i32_0 = arith.constant 0 : i32
    return %arg0, %arg1, %c0_i32 : i32, i32, i32
  }
  func.func @transform_1(%arg0: i32, %arg1: i32) -> (i32, i32) {
    %c0_i32 = arith.constant 0 : i32
    %c0_i32_0 = arith.constant 0 : i32
    %c0_i32_1 = arith.constant 0 : i32
    return %c0_i32, %c0_i32_0 : i32, i32
  }
  func.func @transform_2(%arg0: i32, %arg1: i32) -> (i32, i32) {
    %c0_i32 = arith.constant 0 : i32
    %c0_i32_0 = arith.constant 0 : i32
    %c0_i32_1 = arith.constant 0 : i32
    return %c0_i32, %c0_i32_0 : i32, i32
  }
  func.func @transform_3(%arg0: i32, %arg1: i32) -> (i32, i32) {
    %c0_i32 = arith.constant 0 : i32
    %c0_i32_0 = arith.constant 0 : i32
    %c0_i32_1 = arith.constant 0 : i32
    return %c0_i32, %c0_i32_0 : i32, i32
  }
  func.func @transform_4(%arg0: i32, %arg1: i32) -> (i32, i32) {
    %c0_i32 = arith.constant 0 : i32
    %c0_i32_0 = arith.constant 0 : i32
    %c0_i32_1 = arith.constant 0 : i32
    return %c0_i32, %c0_i32_0 : i32, i32
  }
  func.func @transform_5(%arg0: i32, %arg1: i32) -> (i32, i32) {
    %c0_i32 = arith.constant 0 : i32
    %c0_i32_0 = arith.constant 0 : i32
    %c0_i32_1 = arith.constant 0 : i32
    return %c0_i32, %c0_i32_0 : i32, i32
  }
  func.func @transform_6(%arg0: i32, %arg1: i32) -> (i32, i32) {
    %c0_i32 = arith.constant 0 : i32
    %c0_i32_0 = arith.constant 0 : i32
    %c0_i32_1 = arith.constant 0 : i32
    return %c0_i32, %c0_i32_0 : i32, i32
  }
  func.func @transform_7(%arg0: i32, %arg1: i32) -> (i32, i32) {
    %c0_i32 = arith.constant 0 : i32
    %c0_i32_0 = arith.constant 0 : i32
    %c0_i32_1 = arith.constant 0 : i32
    return %c0_i32, %c0_i32_0 : i32, i32
  }
  func.func @transform_8(%arg0: i32, %arg1: i32) -> (i32, i32) {
    %c0_i32 = arith.constant 0 : i32
    %c0_i32_0 = arith.constant 0 : i32
    %c0_i32_1 = arith.constant 0 : i32
    return %c0_i32, %c0_i32_0 : i32, i32
  }
  func.func @transform_9(%arg0: i32, %arg1: i32) -> (i32, i32) {
    %c0_i32 = arith.constant 0 : i32
    %c0_i32_0 = arith.constant 0 : i32
    %c0_i32_1 = arith.constant 0 : i32
    return %c0_i32, %c0_i32_0 : i32, i32
  }
  func.func @transform_10(%arg0: i32, %arg1: i32) -> (i32, i32) {
    %c0_i32 = arith.constant 0 : i32
    %c0_i32_0 = arith.constant 0 : i32
    %c0_i32_1 = arith.constant 0 : i32
    return %c0_i32, %c0_i32_0 : i32, i32
  }
  func.func @transform_11(%arg0: i32, %arg1: i32) -> (i32, i32, i32) {
    %c0_i32 = arith.constant 0 : i32
    %c0_i32_0 = arith.constant 0 : i32
    return %arg0, %c0_i32, %arg1 : i32, i32, i32
  }
  func.func @transform_12(%arg0: i32, %arg1: i32) -> (i32, i32, i32) {
    %c0_i32 = arith.constant 0 : i32
    %c0_i32_0 = arith.constant 0 : i32
    return %arg0, %c0_i32, %arg1 : i32, i32, i32
  }
}

</mosaic_0001>

<llo_original>
// kernel: tpu_custom_call.1
$region0: #{tpu_custom_call.1}
  #allocation0 [shape = 'u32[]', space=smem, size = 0x4, offset = 0x4, fixed_abs, tag = 'smem constant byte address 0x4 - core index']
  #allocation1 [shape = 'u32[144,128]{1,0:T(1,128)}', space=vmem, size = 0x12000, scoped, tag = 'internal scratch']
  %s0 = inlined_call_operand.vmem [shape: bf16[2,256,288], index: 0, kind: input, shape index: {}]
  %s1 = inlined_call_operand.vmem [shape: bf16[288,32], index: 1, kind: input, shape index: {}]
  %s2 = inlined_call_operand.vmem [shape: f32[1,32], index: 2, kind: input, shape index: {}]
  %s3 = inlined_call_operand.vmem [shape: bf16[32,4], index: 3, kind: input, shape index: {}]
  %s4 = inlined_call_operand.vmem [shape: f32[1,4], index: 4, kind: input, shape index: {}]
  %s5 = inlined_call_operand.vmem [shape: bf16[288,32], index: 5, kind: input, shape index: {}]
  %s6 = inlined_call_operand.vmem [shape: f32[1,32], index: 6, kind: input, shape index: {}]
  %s7 = inlined_call_operand.vmem [shape: bf16[32,16], index: 7, kind: input, shape index: {}]
  %s8 = inlined_call_operand.vmem [shape: f32[1,16], index: 8, kind: input, shape index: {}]
  %s9 = inlined_call_operand.vmem [shape: bf16[16,2], index: 9, kind: input, shape index: {}]
  %s10 = inlined_call_operand.vmem [shape: f32[1,2], index: 10, kind: input, shape index: {}]
  %s11 = inlined_call_operand.hbm [shape: f32[2,4,256], index: 11, kind: output, shape index: {0}]
  %s12 = inlined_call_operand.hbm [shape: f32[2,2,256], index: 12, kind: output, shape index: {1}]
  %13 = xla_tuple %s11, %s12
  %s14 = sld [smem:[#allocation0]]
  $region85: #{tpu_custom_call.1} parent=0
    _
  %s16 = ssub.s32 1, %s14
  %s17 = scalar_select 0, %s16, %s14
  $region1: #{tpu_custom_call.1} parent=0
    #allocation2 [shape = 'u8[8192]{0}', space=vmem, size = 0x2000, scoped, tag = 'output window, operand 0']
    #allocation3 [shape = 's32[2]{0}', space=sflag, size = 0x8, scoped, tag = 'scoped memory for tpu_custom_call.1']
    #allocation4 [shape = 'u8[4096]{0}', space=vmem, size = 0x1000, scoped, tag = 'output window, operand 1']
    #allocation5 [shape = 's32[2]{0}', space=sflag, size = 0x8, scoped, tag = 'scoped memory for tpu_custom_call.1']
    %18 = vsyncpa [#allocation3], 0
    %s19 = scalar_lea.sflag [#allocation3], 1
    %20 = vsyncpa %s19, 0
    %21 = vsyncpa [#allocation5], 0
    %s22 = scalar_lea.sflag [#allocation5], 1
    %23 = vsyncpa %s22, 0
    loop: start=0, step=1, limit=4
    $region2: #{tpu_custom_call.1} parent=1 // loop_pre_header
      _
    $region3: #{tpu_custom_call.1} parent=1 // loop_header
      %s25 = sphi 0, %s29
      %p26 = scmp.ge.s32.totalorder %s25, 4
      %s32 = sphi 0, %s44
      %s33 = sphi 0, %s40
      %s34 = sphi 0, %s32
      %s35 = sphi 0, %s33
      %s36 = sphi 0, %s34
      %s37 = sphi 0, %s35
      %s49 = sphi 0, %s51
      %s52 = sphi 0, %s49
      %s53 = sphi 0, %s52
      %s69 = sphi 0, %s53
      %s73 = sphi 0, %s73
      %s75 = sphi 0, %s73
      %s76 = sphi 0, %s75
      %s90 = sphi 0, %s76
      %s94 = sphi 0, %s94
      %s96 = sphi 0, %s94
      %s97 = sphi 0, %s96
      %s111 = sphi 0, %s97
      %s115 = sphi 0, %s115
      %s117 = sphi 0, %s115
      %s118 = sphi 0, %s117
      %s132 = sphi 0, %s118
      %s136 = sphi 0, %s136
      %s138 = sphi 0, %s136
      %s139 = sphi 0, %s138
      %s153 = sphi 0, %s139
      %s157 = sphi 0, %s157
      %s159 = sphi 0, %s157
      %s160 = sphi 0, %s159
      %s174 = sphi 0, %s160
      %s178 = sphi 0, %s178
      %s180 = sphi 0, %s178
      %s181 = sphi 0, %s180
      %s195 = sphi 0, %s181
      %s199 = sphi 0, %s199
      %s201 = sphi 0, %s199
      %s202 = sphi 0, %s201
      %s216 = sphi 0, %s202
      %s220 = sphi 0, %s220
      %s222 = sphi 0, %s220
      %s223 = sphi 0, %s222
      %s237 = sphi 0, %s223
      %s241 = sphi 0, %s241
      %s243 = sphi 0, %s241
      %s244 = sphi 0, %s243
      %s258 = sphi 0, %s244
      %s262 = sphi 0, %s262
      %s264 = sphi 0, %s262
      %s265 = sphi 0, %s264
      %s279 = sphi 0, %s265
      %s287 = sphi 0, %s289
      %s290 = sphi 0, %s287
      %s291 = sphi 0, %s290
      %s307 = sphi 0, %s291
      %s315 = sphi 0, %s317
      %s318 = sphi 0, %s315
      %s319 = sphi 0, %s318
      %s335 = sphi 0, %s319
    $region4: #{tpu_custom_call.1} parent=1 // loop_header_branch
      %28 = sbr.rel (%p26) target = $region8
    $region5: #{tpu_custom_call.1} parent=1 // loop_body
      %s30 = ssub.s32 %s25, 1
      %s31 = ssub.s32 %s25, 2
      %s38 = sadd.s32 1, %s33
      %p39 = scmp.ge.s32.totalorder %s38, 1
      %s40 = scalar_select %p39, 0, %s38
      %s41 = sadd.s32 1, %s32
      %s42 = scalar_select %p39, %s41, %s32
      %p43 = scmp.ge.s32.totalorder %s42, 2
      %s44 = scalar_select %p43, 0, %s42
      %s45 = ssub.s32 %s32, %s44
      %s46 = ssub.s32 %s33, %s40
      %s47 = sor.u32 %s45, %s46
      %p48 = scmp.eq.s32.totalorder %s47, 0
      %s50 = sadd.s32 %s49, 1
      %s51 = scalar_select %p48, %s49, %s50
      %p54 = pneg %p48
      %p55 = scmp.eq.s32.totalorder %s25, 1
      %p56 = por %p54, %p55
      %p57 = scmp.ne.s32.totalorder %s49, %s52
      %p58 = scmp.eq.s32.totalorder %s25, 0
      %p59 = por %p57, %p58
      %p60 = scmp.ne.s32.totalorder %s49, %s52
      %p61 = scmp.eq.s32.totalorder %s30, 1
      %p62 = por %p60, %p61
      %p63 = scmp.ne.s32.totalorder %s52, %s53
      %p64 = scmp.eq.s32.totalorder %s30, 0
      %p65 = por %p63, %p64
      %p66 = scmp.ne.s32.totalorder %s52, %s53
      %p67 = scmp.eq.s32.totalorder %s31, 1
      %p68 = por %p66, %p67
      %p70 = scmp.ne.s32.totalorder %s53, %s69
      %p71 = scmp.eq.s32.totalorder %s31, 0
      %p72 = por %p70, %p71
      %s74 = sadd.s32 %s73, 1
      %p77 = scmp.eq.s32.totalorder %s25, 1
      %p78 = scmp.ne.s32.totalorder %s73, %s75
      %p79 = scmp.eq.s32.totalorder %s25, 0
      %p80 = por %p78, %p79
      %p81 = scmp.ne.s32.totalorder %s73, %s75
      %p82 = scmp.eq.s32.totalorder %s30, 1
      %p83 = por %p81, %p82
      %p84 = scmp.ne.s32.totalorder %s75, %s76
      %p85 = scmp.eq.s32.totalorder %s30, 0
      %p86 = por %p84, %p85
      %p87 = scmp.ne.s32.totalorder %s75, %s76
      %p88 = scmp.eq.s32.totalorder %s31, 1
      %p89 = por %p87, %p88
      %p91 = scmp.ne.s32.totalorder %s76, %s90
      %p92 = scmp.eq.s32.totalorder %s31, 0
      %p93 = por %p91, %p92
      %s95 = sadd.s32 %s94, 1
      %p98 = scmp.eq.s32.totalorder %s25, 1
      %p99 = scmp.ne.s32.totalorder %s94, %s96
      %p100 = scmp.eq.s32.totalorder %s25, 0
      %p101 = por %p99, %p100
      %p102 = scmp.ne.s32.totalorder %s94, %s96
      %p103 = scmp.eq.s32.totalorder %s30, 1
      %p104 = por %p102, %p103
      %p105 = scmp.ne.s32.totalorder %s96, %s97
      %p106 = scmp.eq.s32.totalorder %s30, 0
      %p107 = por %p105, %p106
      %p108 = scmp.ne.s32.totalorder %s96, %s97
      %p109 = scmp.eq.s32.totalorder %s31, 1
      %p110 = por %p108, %p109
      %p112 = scmp.ne.s32.totalorder %s97, %s111
      %p113 = scmp.eq.s32.totalorder %s31, 0
      %p114 = por %p112, %p113
      %s116 = sadd.s32 %s115, 1
      %p119 = scmp.eq.s32.totalorder %s25, 1
      %p120 = scmp.ne.s32.totalorder %s115, %s117
      %p121 = scmp.eq.s32.totalorder %s25, 0
      %p122 = por %p120, %p121
      %p123 = scmp.ne.s32.totalorder %s115, %s117
      %p124 = scmp.eq.s32.totalorder %s30, 1
      %p125 = por %p123, %p124
      %p126 = scmp.ne.s32.totalorder %s117, %s118
      %p127 = scmp.eq.s32.totalorder %s30, 0
      %p128 = por %p126, %p127
      %p129 = scmp.ne.s32.totalorder %s117, %s118
      %p130 = scmp.eq.s32.totalorder %s31, 1
      %p131 = por %p129, %p130
      %p133 = scmp.ne.s32.totalorder %s118, %s132
      %p134 = scmp.eq.s32.totalorder %s31, 0
      %p135 = por %p133, %p134
      %s137 = sadd.s32 %s136, 1
      %p140 = scmp.eq.s32.totalorder %s25, 1
      %p141 = scmp.ne.s32.totalorder %s136, %s138
      %p142 = scmp.eq.s32.totalorder %s25, 0
      %p143 = por %p141, %p142
      %p144 = scmp.ne.s32.totalorder %s136, %s138
      %p145 = scmp.eq.s32.totalorder %s30, 1
      %p146 = por %p144, %p145
      %p147 = scmp.ne.s32.totalorder %s138, %s139
      %p148 = scmp.eq.s32.totalorder %s30, 0
      %p149 = por %p147, %p148
      %p150 = scmp.ne.s32.totalorder %s138, %s139
      %p151 = scmp.eq.s32.totalorder %s31, 1
      %p152 = por %p150, %p151
      %p154 = scmp.ne.s32.totalorder %s139, %s153
      %p155 = scmp.eq.s32.totalorder %s31, 0
      %p156 = por %p154, %p155
      %s158 = sadd.s32 %s157, 1
      %p161 = scmp.eq.s32.totalorder %s25, 1
      %p162 = scmp.ne.s32.totalorder %s157, %s159
      %p163 = scmp.eq.s32.totalorder %s25, 0
      %p164 = por %p162, %p163
      %p165 = scmp.ne.s32.totalorder %s157, %s159
      %p166 = scmp.eq.s32.totalorder %s30, 1
      %p167 = por %p165, %p166
      %p168 = scmp.ne.s32.totalorder %s159, %s160
      %p169 = scmp.eq.s32.totalorder %s30, 0
      %p170 = por %p168, %p169
      %p171 = scmp.ne.s32.totalorder %s159, %s160
      %p172 = scmp.eq.s32.totalorder %s31, 1
      %p173 = por %p171, %p172
      %p175 = scmp.ne.s32.totalorder %s160, %s174
      %p176 = scmp.eq.s32.totalorder %s31, 0
      %p177 = por %p175, %p176
      %s179 = sadd.s32 %s178, 1
      %p182 = scmp.eq.s32.totalorder %s25, 1
      %p183 = scmp.ne.s32.totalorder %s178, %s180
      %p184 = scmp.eq.s32.totalorder %s25, 0
      %p185 = por %p183, %p184
      %p186 = scmp.ne.s32.totalorder %s178, %s180
      %p187 = scmp.eq.s32.totalorder %s30, 1
      %p188 = por %p186, %p187
      %p189 = scmp.ne.s32.totalorder %s180, %s181
      %p190 = scmp.eq.s32.totalorder %s30, 0
      %p191 = por %p189, %p190
      %p192 = scmp.ne.s32.totalorder %s180, %s181
      %p193 = scmp.eq.s32.totalorder %s31, 1
      %p194 = por %p192, %p193
      %p196 = scmp.ne.s32.totalorder %s181, %s195
      %p197 = scmp.eq.s32.totalorder %s31, 0
      %p198 = por %p196, %p197
      %s200 = sadd.s32 %s199, 1
      %p203 = scmp.eq.s32.totalorder %s25, 1
      %p204 = scmp.ne.s32.totalorder %s199, %s201
      %p205 = scmp.eq.s32.totalorder %s25, 0
      %p206 = por %p204, %p205
      %p207 = scmp.ne.s32.totalorder %s199, %s201
      %p208 = scmp.eq.s32.totalorder %s30, 1
      %p209 = por %p207, %p208
      %p210 = scmp.ne.s32.totalorder %s201, %s202
      %p211 = scmp.eq.s32.totalorder %s30, 0
      %p212 = por %p210, %p211
      %p213 = scmp.ne.s32.totalorder %s201, %s202
      %p214 = scmp.eq.s32.totalorder %s31, 1
      %p215 = por %p213, %p214
      %p217 = scmp.ne.s32.totalorder %s202, %s216
      %p218 = scmp.eq.s32.totalorder %s31, 0
      %p219 = por %p217, %p218
      %s221 = sadd.s32 %s220, 1
      %p224 = scmp.eq.s32.totalorder %s25, 1
      %p225 = scmp.ne.s32.totalorder %s220, %s222
      %p226 = scmp.eq.s32.totalorder %s25, 0
      %p227 = por %p225, %p226
      %p228 = scmp.ne.s32.totalorder %s220, %s222
      %p229 = scmp.eq.s32.totalorder %s30, 1
      %p230 = por %p228, %p229
      %p231 = scmp.ne.s32.totalorder %s222, %s223
      %p232 = scmp.eq.s32.totalorder %s30, 0
      %p233 = por %p231, %p232
      %p234 = scmp.ne.s32.totalorder %s222, %s223
      %p235 = scmp.eq.s32.totalorder %s31, 1
      %p236 = por %p234, %p235
      %p238 = scmp.ne.s32.totalorder %s223, %s237
      %p239 = scmp.eq.s32.totalorder %s31, 0
      %p240 = por %p238, %p239
      %s242 = sadd.s32 %s241, 1
      %p245 = scmp.eq.s32.totalorder %s25, 1
      %p246 = scmp.ne.s32.totalorder %s241, %s243
      %p247 = scmp.eq.s32.totalorder %s25, 0
      %p248 = por %p246, %p247
      %p249 = scmp.ne.s32.totalorder %s241, %s243
      %p250 = scmp.eq.s32.totalorder %s30, 1
      %p251 = por %p249, %p250
      %p252 = scmp.ne.s32.totalorder %s243, %s244
      %p253 = scmp.eq.s32.totalorder %s30, 0
      %p254 = por %p252, %p253
      %p255 = scmp.ne.s32.totalorder %s243, %s244
      %p256 = scmp.eq.s32.totalorder %s31, 1
      %p257 = por %p255, %p256
      %p259 = scmp.ne.s32.totalorder %s244, %s258
      %p260 = scmp.eq.s32.totalorder %s31, 0
      %p261 = por %p259, %p260
      %s263 = sadd.s32 %s262, 1
      %p266 = scmp.eq.s32.totalorder %s25, 1
      %p267 = scmp.ne.s32.totalorder %s262, %s264
      %p268 = scmp.eq.s32.totalorder %s25, 0
      %p269 = por %p267, %p268
      %p270 = scmp.ne.s32.totalorder %s262, %s264
      %p271 = scmp.eq.s32.totalorder %s30, 1
      %p272 = por %p270, %p271
      %p273 = scmp.ne.s32.totalorder %s264, %s265
      %p274 = scmp.eq.s32.totalorder %s30, 0
      %p275 = por %p273, %p274
      %p276 = scmp.ne.s32.totalorder %s264, %s265
      %p277 = scmp.eq.s32.totalorder %s31, 1
      %p278 = por %p276, %p277
      %p280 = scmp.ne.s32.totalorder %s265, %s279
      %p281 = scmp.eq.s32.totalorder %s31, 0
      %p282 = por %p280, %p281
      %s283 = ssub.s32 %s32, %s44
      %s284 = ssub.s32 %s33, %s40
      %s285 = sor.u32 %s283, %s284
      %p286 = scmp.eq.s32.totalorder %s285, 0
      %s288 = sadd.s32 %s287, 1
      %s289 = scalar_select %p286, %s287, %s288
      %p292 = pneg %p286
      %p293 = scmp.eq.s32.totalorder %s25, 1
      %p294 = por %p292, %p293
      %p295 = scmp.ne.s32.totalorder %s287, %s290
      %p296 = scmp.eq.s32.totalorder %s25, 0
      %p297 = por %p295, %p296
      %p298 = scmp.ne.s32.totalorder %s287, %s290
      %p299 = scmp.eq.s32.totalorder %s30, 1
      %p300 = por %p298, %p299
      %p301 = scmp.ne.s32.totalorder %s290, %s291
      %p302 = scmp.eq.s32.totalorder %s30, 0
      %p303 = por %p301, %p302
      %p304 = scmp.ne.s32.totalorder %s290, %s291
      %p305 = scmp.eq.s32.totalorder %s31, 1
      %p306 = por %p304, %p305
      %p308 = scmp.ne.s32.totalorder %s291, %s307
      %p309 = scmp.eq.s32.totalorder %s31, 0
      %p310 = por %p308, %p309
      %s311 = ssub.s32 %s32, %s44
      %s312 = ssub.s32 %s33, %s40
      %s313 = sor.u32 %s311, %s312
      %p314 = scmp.eq.s32.totalorder %s313, 0
      %s316 = sadd.s32 %s315, 1
      %s317 = scalar_select %p314, %s315, %s316
      %p320 = pneg %p314
      %p321 = scmp.eq.s32.totalorder %s25, 1
      %p322 = por %p320, %p321
      %p323 = scmp.ne.s32.totalorder %s315, %s318
      %p324 = scmp.eq.s32.totalorder %s25, 0
      %p325 = por %p323, %p324
      %p326 = scmp.ne.s32.totalorder %s315, %s318
      %p327 = scmp.eq.s32.totalorder %s30, 1
      %p328 = por %p326, %p327
      %p329 = scmp.ne.s32.totalorder %s318, %s319
      %p330 = scmp.eq.s32.totalorder %s30, 0
      %p331 = por %p329, %p330
      %p332 = scmp.ne.s32.totalorder %s318, %s319
      %p333 = scmp.eq.s32.totalorder %s31, 1
      %p334 = por %p332, %p333
      %p336 = scmp.ne.s32.totalorder %s319, %s335
      %p337 = scmp.eq.s32.totalorder %s31, 0
      %p338 = por %p336, %p337
      %p339 = scmp.le.s32.totalorder 1, %s25
      %p340 = scmp.lt.s32.totalorder %s25, 3
      %p341 = pnand %p339, %p340
      %p342 = pneg %p341
      // Predicated region
      $region9: #{tpu_custom_call.1} parent=5 // pred_check
        _
      $region10: #{tpu_custom_call.1} parent=5 // pred_check_branch
        %344 = sbr.rel (%p341) target = $region12
      $region11: #{tpu_custom_call.1} parent=5 // pred_region
        %s345 = ssub.s32 %s25, 1
        // Predicated region
        $region13: #{tpu_custom_call.1} parent=11 // pred_check
          %p346 = pneg %p86
        $region14: #{tpu_custom_call.1} parent=11 // pred_check_branch
          %348 = sbr.rel (%p346) target = $region16
        $region15: #{tpu_custom_call.1} parent=11 // pred_region
          _
        $region16: #{tpu_custom_call.1} parent=11 // pred_fallthru
          _
        // Predicated region
        $region17: #{tpu_custom_call.1} parent=11 // pred_check
          %p349 = pneg %p107
        $region18: #{tpu_custom_call.1} parent=11 // pred_check_branch
          %351 = sbr.rel (%p349) target = $region20
        $region19: #{tpu_custom_call.1} parent=11 // pred_region
          _
        $region20: #{tpu_custom_call.1} parent=11 // pred_fallthru
          _
        // Predicated region
        $region21: #{tpu_custom_call.1} parent=11 // pred_check
          %p352 = pneg %p128
        $region22: #{tpu_custom_call.1} parent=11 // pred_check_branch
          %354 = sbr.rel (%p352) target = $region24
        $region23: #{tpu_custom_call.1} parent=11 // pred_region
          _
        $region24: #{tpu_custom_call.1} parent=11 // pred_fallthru
          _
        // Predicated region
        $region25: #{tpu_custom_call.1} parent=11 // pred_check
          %p355 = pneg %p149
        $region26: #{tpu_custom_call.1} parent=11 // pred_check_branch
          %357 = sbr.rel (%p355) target = $region28
        $region27: #{tpu_custom_call.1} parent=11 // pred_region
          _
        $region28: #{tpu_custom_call.1} parent=11 // pred_fallthru
          _
        // Predicated region
        $region29: #{tpu_custom_call.1} parent=11 // pred_check
          %p358 = pneg %p170
        $region30: #{tpu_custom_call.1} parent=11 // pred_check_branch
          %360 = sbr.rel (%p358) target = $region32
        $region31: #{tpu_custom_call.1} parent=11 // pred_region
          _
        $region32: #{tpu_custom_call.1} parent=11 // pred_fallthru
          _
        // Predicated region
        $region33: #{tpu_custom_call.1} parent=11 // pred_check
          %p361 = pneg %p191
        $region34: #{tpu_custom_call.1} parent=11 // pred_check_branch
          %363 = sbr.rel (%p361) target = $region36
        $region35: #{tpu_custom_call.1} parent=11 // pred_region
          _
        $region36: #{tpu_custom_call.1} parent=11 // pred_fallthru
          _
        // Predicated region
        $region37: #{tpu_custom_call.1} parent=11 // pred_check
          %p364 = pneg %p212
        $region38: #{tpu_custom_call.1} parent=11 // pred_check_branch
          %366 = sbr.rel (%p364) target = $region40
        $region39: #{tpu_custom_call.1} parent=11 // pred_region
          _
        $region40: #{tpu_custom_call.1} parent=11 // pred_fallthru
          _
        // Predicated region
        $region41: #{tpu_custom_call.1} parent=11 // pred_check
          %p367 = pneg %p233
        $region42: #{tpu_custom_call.1} parent=11 // pred_check_branch
          %369 = sbr.rel (%p367) target = $region44
        $region43: #{tpu_custom_call.1} parent=11 // pred_region
          _
        $region44: #{tpu_custom_call.1} parent=11 // pred_fallthru
          _
        // Predicated region
        $region45: #{tpu_custom_call.1} parent=11 // pred_check
          %p370 = pneg %p254
        $region46: #{tpu_custom_call.1} parent=11 // pred_check_branch
          %372 = sbr.rel (%p370) target = $region48
        $region47: #{tpu_custom_call.1} parent=11 // pred_region
          _
        $region48: #{tpu_custom_call.1} parent=11 // pred_fallthru
          _
        // Predicated region
        $region49: #{tpu_custom_call.1} parent=11 // pred_check
          %p373 = pneg %p275
        $region50: #{tpu_custom_call.1} parent=11 // pred_check_branch
          %375 = sbr.rel (%p373) target = $region52
        $region51: #{tpu_custom_call.1} parent=11 // pred_region
          _
        $region52: #{tpu_custom_call.1} parent=11 // pred_fallthru
          _
      $region12: #{tpu_custom_call.1} parent=5 // pred_fallthru
        _
      %p376 = scmp.lt.s32.totalorder %s25, 2
      // Predicated region
      $region53: #{tpu_custom_call.1} parent=5 // pred_check
        %p377 = pneg %p376
      $region54: #{tpu_custom_call.1} parent=5 // pred_check_branch
        %379 = sbr.rel (%p377) target = $region56
      $region55: #{tpu_custom_call.1} parent=5 // pred_region
        // Predicated region
        $region57: #{tpu_custom_call.1} parent=55 // pred_check
          %p380 = pneg %p59
        $region58: #{tpu_custom_call.1} parent=55 // pred_check_branch
          %382 = sbr.rel (%p380) target = $region60
        $region59: #{tpu_custom_call.1} parent=55 // pred_region
          %s383 = smul.u32 32, %s33
          %p384 = scmp.lt.s32.totalorder %s32, 1
          %s385 = scalar_select %p384, %s32, 1
          %p386 = scmp.lt.s32.totalorder %s383, 31
          %s387 = scalar_select %p386, %s383, 31
          %s388 = smul.addr %s387, 3
          %s389 = smul.addr %s385, 96
          %s390 = sadd.s32 %s388, %s389
          %s391 = smul.addr %s390, 4
          %s392 = scalar_lea.vmem %s0, %s391
          %s393 = smul.u32 32, %s33
        $region60: #{tpu_custom_call.1} parent=55 // pred_fallthru
          _
      $region56: #{tpu_custom_call.1} parent=5 // pred_fallthru
        _
      %p394 = scmp.le.s32.totalorder 1, %s25
      %p395 = scmp.lt.s32.totalorder %s25, 3
      %p396 = pnand %p394, %p395
      %p397 = pneg %p396
      // Predicated region
      $region61: #{tpu_custom_call.1} parent=5 // pred_check
        _
      $region62: #{tpu_custom_call.1} parent=5 // pred_check_branch
        %399 = sbr.rel (%p396) target = $region64
      $region63: #{tpu_custom_call.1} parent=5 // pred_region
        %s400 = ssub.s32 %s25, 1
        %s401 = smul.u32 32, %s35
        %p402 = scmp.lt.s32.totalorder %s34, 1
        %s403 = scalar_select %p402, %s34, 1
        %p404 = scmp.lt.s32.totalorder %s401, 31
        %s405 = scalar_select %p404, %s401, 31
        %s406 = smul.addr %s405, 3
        %s407 = smul.addr %s403, 96
        %s408 = sadd.s32 %s406, %s407
        %s409 = smul.addr %s408, 4
        %s410 = scalar_lea.vmem %s0, %s409
        %p411 = pneg %p65
        %p412 = pneg %p62
        %p413 = pneg %p86
        %p414 = pneg %p83
        %p415 = pneg %p107
        %p416 = pneg %p104
        %p417 = pneg %p128
        %p418 = pneg %p125
        %p419 = pneg %p149
        %p420 = pneg %p146
        %p421 = pneg %p170
        %p422 = pneg %p167
        %p423 = pneg %p191
        %p424 = pneg %p188
        %p425 = pneg %p212
        %p426 = pneg %p209
        %p427 = pneg %p233
        %p428 = pneg %p230
        %p429 = pneg %p254
        %p430 = pneg %p251
        %p431 = pneg %p275
        %p432 = pneg %p272
        %p433 = pneg %p303
        %p434 = pneg %p300
        %s435 = sand.u32 %s290, 1
        %s436 = scalar_lea.sflag [#allocation3], %s435
        %s437 = sand.u32 %s290, 1
        %s438 = smul.addr %s437, 8
        %s439 = scalar_lea.vmem [#allocation2], %s438
        %p440 = pneg %p331
        %p441 = pneg %p328
        %s442 = sand.u32 %s318, 1
        %s443 = scalar_lea.sflag [#allocation5], %s442
        %s444 = sand.u32 %s318, 1
        %s445 = smul.addr %s444, 4
        %s446 = scalar_lea.vmem [#allocation4], %s445
        %s447 = smul.u32 32, %s35
        %p448 = scmp.lt.s32.totalorder %s34, 1
        %s449 = scalar_select %p448, %s34, 1
        %p450 = scmp.lt.s32.totalorder %s447, 31
        %s451 = scalar_select %p450, %s447, 31
        %s452 = smul.addr %s451, 3
        %s453 = smul.addr %s449, 96
        %s454 = sadd.s32 %s452, %s453
        %s455 = smul.addr %s454, 4
        %s456 = scalar_lea.vmem %s0, %s455
        %s457 = smul.u32 32, %s35
        %s458 = smul.u32 2, %s35
        %s459 = smul.u32 2, %s35
        %v461 = vld [vmem:[%s456] sm:$0xff]
        %v462 = vld [vmem:[%s456 + $0x8] sm:$0xf]
        %v463 = vld [vmem:[%s456 + $0xc] sm:$0xff]
        %v464 = vld [vmem:[%s456 + $0x14] sm:$0xf]
        %v465 = vld [vmem:[%s456 + $0x18] sm:$0xff]
        %v466 = vld [vmem:[%s456 + $0x20] sm:$0xf]
        %v467 = vld [vmem:[%s456 + $0x24] sm:$0xff]
        %v468 = vld [vmem:[%s456 + $0x2c] sm:$0xf]
        %v469 = vld [vmem:[%s456 + $0x30] sm:$0xff]
        %v470 = vld [vmem:[%s456 + $0x38] sm:$0xf]
        %v471 = vld [vmem:[%s456 + $0x3c] sm:$0xff]
        %v472 = vld [vmem:[%s456 + $0x44] sm:$0xf]
        %v473 = vld [vmem:[%s456 + $0x48] sm:$0xff]
        %v474 = vld [vmem:[%s456 + $0x50] sm:$0xf]
        %v475 = vld [vmem:[%s456 + $0x54] sm:$0xff]
        %v476 = vld [vmem:[%s456 + $0x5c] sm:$0xf]
        %v477 = vld [vmem:[%s456 + $0x60] sm:$0xff]
        %v478 = vld [vmem:[%s456 + $0x68] sm:$0xf]
        %v479 = vld [vmem:[%s456 + $0x6c] sm:$0xff]
        %v480 = vld [vmem:[%s456 + $0x74] sm:$0xf]
        %v481 = vld [vmem:[%s456 + $0x78] sm:$0xff]
        %v482 = vld [vmem:[%s456 + $0x80] sm:$0xf]
        %v483 = vld [vmem:[%s456 + $0x84] sm:$0xff]
        %v484 = vld [vmem:[%s456 + $0x8c] sm:$0xf]
        %v485 = vld [vmem:[%s456 + $0x90] sm:$0xff]
        %v486 = vld [vmem:[%s456 + $0x98] sm:$0xf]
        %v487 = vld [vmem:[%s456 + $0x9c] sm:$0xff]
        %v488 = vld [vmem:[%s456 + $0xa4] sm:$0xf]
        %v489 = vld [vmem:[%s456 + $0xa8] sm:$0xff]
        %v490 = vld [vmem:[%s456 + $0xb0] sm:$0xf]
        %v491 = vld [vmem:[%s456 + $0xb4] sm:$0xff]
        %v492 = vld [vmem:[%s456 + $0xbc] sm:$0xf]
        %v493 = vld [vmem:[%s456 + $0xc0] sm:$0xff]
        %v494 = vld [vmem:[%s456 + $0xc8] sm:$0xf]
        %v495 = vld [vmem:[%s456 + $0xcc] sm:$0xff]
        %v496 = vld [vmem:[%s456 + $0xd4] sm:$0xf]
        %v497 = vld [vmem:[%s456 + $0xd8] sm:$0xff]
        %v498 = vld [vmem:[%s456 + $0xe0] sm:$0xf]
        %v499 = vld [vmem:[%s456 + $0xe4] sm:$0xff]
        %v500 = vld [vmem:[%s456 + $0xec] sm:$0xf]
        %v501 = vld [vmem:[%s456 + $0xf0] sm:$0xff]
        %v502 = vld [vmem:[%s456 + $0xf8] sm:$0xf]
        %v503 = vld [vmem:[%s456 + $0xfc] sm:$0xff]
        %v504 = vld [vmem:[%s456 + $0x104] sm:$0xf]
        %v505 = vld [vmem:[%s456 + $0x108] sm:$0xff]
        %v506 = vld [vmem:[%s456 + $0x110] sm:$0xf]
        %v507 = vld [vmem:[%s456 + $0x114] sm:$0xff]
        %v508 = vld [vmem:[%s456 + $0x11c] sm:$0xf]
        %v509 = vld [vmem:[%s456 + $0x120] sm:$0xff]
        %v510 = vld [vmem:[%s456 + $0x128] sm:$0xf]
        %v511 = vld [vmem:[%s456 + $0x12c] sm:$0xff]
        %v512 = vld [vmem:[%s456 + $0x134] sm:$0xf]
        %v513 = vld [vmem:[%s456 + $0x138] sm:$0xff]
        %v514 = vld [vmem:[%s456 + $0x140] sm:$0xf]
        %v515 = vld [vmem:[%s456 + $0x144] sm:$0xff]
        %v516 = vld [vmem:[%s456 + $0x14c] sm:$0xf]
        %v517 = vld [vmem:[%s456 + $0x150] sm:$0xff]
        %v518 = vld [vmem:[%s456 + $0x158] sm:$0xf]
        %v519 = vld [vmem:[%s456 + $0x15c] sm:$0xff]
        %v520 = vld [vmem:[%s456 + $0x164] sm:$0xf]
        %v521 = vld [vmem:[%s456 + $0x168] sm:$0xff]
        %v522 = vld [vmem:[%s456 + $0x170] sm:$0xf]
        %v523 = vld [vmem:[%s456 + $0x174] sm:$0xff]
        %v524 = vld [vmem:[%s456 + $0x17c] sm:$0xf]
        %v525 = vld [vmem:[%s1] sm:$0xf]
        %v526 = vld [vmem:[%s1 + $0x4] sm:$0xf]
        %v527 = vld [vmem:[%s1 + $0x8] sm:$0xf]
        %v528 = vld [vmem:[%s1 + $0xc] sm:$0xf]
        %v529 = vld [vmem:[%s1 + $0x10] sm:$0xf]
        %v530 = vld [vmem:[%s1 + $0x14] sm:$0xf]
        %v531 = vld [vmem:[%s1 + $0x18] sm:$0xf]
        %v532 = vld [vmem:[%s1 + $0x1c] sm:$0xf]
        %v533 = vld [vmem:[%s1 + $0x20] sm:$0xf]
        %v534 = vld [vmem:[%s1 + $0x24] sm:$0xf]
        %v535 = vld [vmem:[%s1 + $0x28] sm:$0xf]
        %v536 = vld [vmem:[%s1 + $0x2c] sm:$0xf]
        %v537 = vld [vmem:[%s1 + $0x30] sm:$0xf]
        %v538 = vld [vmem:[%s1 + $0x34] sm:$0xf]
        %v539 = vld [vmem:[%s1 + $0x38] sm:$0xf]
        %v540 = vld [vmem:[%s1 + $0x3c] sm:$0xf]
        %v541 = vld [vmem:[%s1 + $0x40] sm:$0xf]
        %v542 = vld [vmem:[%s1 + $0x44] sm:$0xf]
        %v543 = vld [vmem:[%s1 + $0x48] sm:$0xf]
        %v544 = vld [vmem:[%s1 + $0x4c] sm:$0xf]
        %v545 = vld [vmem:[%s1 + $0x50] sm:$0xf]
        %v546 = vld [vmem:[%s1 + $0x54] sm:$0xf]
        %v547 = vld [vmem:[%s1 + $0x58] sm:$0xf]
        %v548 = vld [vmem:[%s1 + $0x5c] sm:$0xf]
        %v549 = vld [vmem:[%s1 + $0x60] sm:$0xf]
        %v550 = vld [vmem:[%s1 + $0x64] sm:$0xf]
        %v551 = vld [vmem:[%s1 + $0x68] sm:$0xf]
        %v552 = vld [vmem:[%s1 + $0x6c] sm:$0xf]
        %v553 = vld [vmem:[%s1 + $0x70] sm:$0xf]
        %v554 = vld [vmem:[%s1 + $0x74] sm:$0xf]
        %v555 = vld [vmem:[%s1 + $0x78] sm:$0xf]
        %v556 = vld [vmem:[%s1 + $0x7c] sm:$0xf]
        %v557 = vld [vmem:[%s1 + $0x80] sm:$0xf]
        %v558 = vld [vmem:[%s1 + $0x84] sm:$0xf]
        %v559 = vld [vmem:[%s1 + $0x88] sm:$0xf]
        %v560 = vld [vmem:[%s1 + $0x8c] sm:$0xf]
        %v561 = vld [vmem:[%s2] sm:$0x1]
        %v563 = vlaneseq
        %v564 = vshrl.u32 %v563, 7
        %v565 = vsub.s32 0, %v564
        %v566 = vrot.slane %v561, %v565
        %v632 = vunpack.c.l.b16 %v461
        %v633 = vunpack.c.h.b16 %v461
        %v634 = vunpack.c.l.b16 %v462
        %v635 = vunpack.c.l.b16 %v463
        %v636 = vunpack.c.h.b16 %v463
        %v637 = vunpack.c.l.b16 %v464
        %v638 = vunpack.c.l.b16 %v465
        %v639 = vunpack.c.h.b16 %v465
        %v640 = vunpack.c.l.b16 %v466
        %v641 = vunpack.c.l.b16 %v467
        %v642 = vunpack.c.h.b16 %v467
        %v643 = vunpack.c.l.b16 %v468
        %v644 = vunpack.c.l.b16 %v469
        %v645 = vunpack.c.h.b16 %v469
        %v646 = vunpack.c.l.b16 %v470
        %v647 = vunpack.c.l.b16 %v471
        %v648 = vunpack.c.h.b16 %v471
        %v649 = vunpack.c.l.b16 %v472
        %v650 = vunpack.c.l.b16 %v473
        %v651 = vunpack.c.h.b16 %v473
        %v652 = vunpack.c.l.b16 %v474
        %v653 = vunpack.c.l.b16 %v475
        %v654 = vunpack.c.h.b16 %v475
        %v655 = vunpack.c.l.b16 %v476
        %v656 = vunpack.c.l.b16 %v477
        %v657 = vunpack.c.h.b16 %v477
        %v658 = vunpack.c.l.b16 %v478
        %v659 = vunpack.c.l.b16 %v479
        %v660 = vunpack.c.h.b16 %v479
        %v661 = vunpack.c.l.b16 %v480
        %v662 = vunpack.c.l.b16 %v481
        %v663 = vunpack.c.h.b16 %v481
        %v664 = vunpack.c.l.b16 %v482
        %v665 = vunpack.c.l.b16 %v483
        %v666 = vunpack.c.h.b16 %v483
        %v667 = vunpack.c.l.b16 %v484
        %v668 = vunpack.c.l.b16 %v485
        %v669 = vunpack.c.h.b16 %v485
        %v670 = vunpack.c.l.b16 %v486
        %v671 = vunpack.c.l.b16 %v487
        %v672 = vunpack.c.h.b16 %v487
        %v673 = vunpack.c.l.b16 %v488
        %v674 = vunpack.c.l.b16 %v489
        %v675 = vunpack.c.h.b16 %v489
        %v676 = vunpack.c.l.b16 %v490
        %v677 = vunpack.c.l.b16 %v491
        %v678 = vunpack.c.h.b16 %v491
        %v679 = vunpack.c.l.b16 %v492
        %v680 = vunpack.c.l.b16 %v493
        %v681 = vunpack.c.h.b16 %v493
        %v682 = vunpack.c.l.b16 %v494
        %v683 = vunpack.c.l.b16 %v495
        %v684 = vunpack.c.h.b16 %v495
        %v685 = vunpack.c.l.b16 %v496
        %v686 = vunpack.c.l.b16 %v497
        %v687 = vunpack.c.h.b16 %v497
        %v688 = vunpack.c.l.b16 %v498
        %v689 = vunpack.c.l.b16 %v499
        %v690 = vunpack.c.h.b16 %v499
        %v691 = vunpack.c.l.b16 %v500
        %v692 = vunpack.c.l.b16 %v501
        %v693 = vunpack.c.h.b16 %v501
        %v694 = vunpack.c.l.b16 %v502
        %v695 = vunpack.c.l.b16 %v503
        %v696 = vunpack.c.h.b16 %v503
        %v697 = vunpack.c.l.b16 %v504
        %v698 = vunpack.c.l.b16 %v505
        %v699 = vunpack.c.h.b16 %v505
        %v700 = vunpack.c.l.b16 %v506
        %v701 = vunpack.c.l.b16 %v507
        %v702 = vunpack.c.h.b16 %v507
        %v703 = vunpack.c.l.b16 %v508
        %v704 = vunpack.c.l.b16 %v509
        %v705 = vunpack.c.h.b16 %v509
        %v706 = vunpack.c.l.b16 %v510
        %v707 = vunpack.c.l.b16 %v511
        %v708 = vunpack.c.h.b16 %v511
        %v709 = vunpack.c.l.b16 %v512
        %v710 = vunpack.c.l.b16 %v513
        %v711 = vunpack.c.h.b16 %v513
        %v712 = vunpack.c.l.b16 %v514
        %v713 = vunpack.c.l.b16 %v515
        %v714 = vunpack.c.h.b16 %v515
        %v715 = vunpack.c.l.b16 %v516
        %v716 = vunpack.c.l.b16 %v517
        %v717 = vunpack.c.h.b16 %v517
        %v718 = vunpack.c.l.b16 %v518
        %v719 = vunpack.c.l.b16 %v519
        %v720 = vunpack.c.h.b16 %v519
        %v721 = vunpack.c.l.b16 %v520
        %v722 = vunpack.c.l.b16 %v521
        %v723 = vunpack.c.h.b16 %v521
        %v724 = vunpack.c.l.b16 %v522
        %v725 = vunpack.c.l.b16 %v523
        %v726 = vunpack.c.h.b16 %v523
        %v727 = vunpack.c.l.b16 %v524
        %v728 = vpack.c.b16 %v635, %v632
        %v729 = vpack.c.b16 %v636, %v633
        %v730 = vpack.c.b16 %v637, %v634
        %v731 = vpack.c.b16 %v641, %v638
        %v732 = vpack.c.b16 %v642, %v639
        %v733 = vpack.c.b16 %v643, %v640
        %v734 = vpack.c.b16 %v647, %v644
        %v735 = vpack.c.b16 %v648, %v645
        %v736 = vpack.c.b16 %v649, %v646
        %v737 = vpack.c.b16 %v653, %v650
        %v738 = vpack.c.b16 %v654, %v651
        %v739 = vpack.c.b16 %v655, %v652
        %v740 = vpack.c.b16 %v659, %v656
        %v741 = vpack.c.b16 %v660, %v657
        %v742 = vpack.c.b16 %v661, %v658
        %v743 = vpack.c.b16 %v665, %v662
        %v744 = vpack.c.b16 %v666, %v663
        %v745 = vpack.c.b16 %v667, %v664
        %v746 = vpack.c.b16 %v671, %v668
        %v747 = vpack.c.b16 %v672, %v669
        %v748 = vpack.c.b16 %v673, %v670
        %v749 = vpack.c.b16 %v677, %v674
        %v750 = vpack.c.b16 %v678, %v675
        %v751 = vpack.c.b16 %v679, %v676
        %v752 = vpack.c.b16 %v683, %v680
        %v753 = vpack.c.b16 %v684, %v681
        %v754 = vpack.c.b16 %v685, %v682
        %v755 = vpack.c.b16 %v689, %v686
        %v756 = vpack.c.b16 %v690, %v687
        %v757 = vpack.c.b16 %v691, %v688
        %v758 = vpack.c.b16 %v695, %v692
        %v759 = vpack.c.b16 %v696, %v693
        %v760 = vpack.c.b16 %v697, %v694
        %v761 = vpack.c.b16 %v701, %v698
        %v762 = vpack.c.b16 %v702, %v699
        %v763 = vpack.c.b16 %v703, %v700
        %v764 = vpack.c.b16 %v707, %v704
        %v765 = vpack.c.b16 %v708, %v705
        %v766 = vpack.c.b16 %v709, %v706
        %v767 = vpack.c.b16 %v713, %v710
        %v768 = vpack.c.b16 %v714, %v711
        %v769 = vpack.c.b16 %v715, %v712
        %v770 = vpack.c.b16 %v719, %v716
        %v771 = vpack.c.b16 %v720, %v717
        %v772 = vpack.c.b16 %v721, %v718
        %v773 = vpack.c.b16 %v725, %v722
        %v774 = vpack.c.b16 %v726, %v723
        %v775 = vpack.c.b16 %v727, %v724
        %v844 = vunpack.c.l.b16 %v525
        %v845 = vunpack.c.l.b16 %v526
        %v846 = vunpack.c.l.b16 %v527
        %v847 = vunpack.c.l.b16 %v528
        %v848 = vunpack.c.l.b16 %v529
        %v849 = vunpack.c.l.b16 %v530
        %v850 = vunpack.c.l.b16 %v531
        %v851 = vunpack.c.l.b16 %v532
        %v852 = vunpack.c.l.b16 %v533
        %v853 = vunpack.c.l.b16 %v534
        %v854 = vunpack.c.l.b16 %v535
        %v855 = vunpack.c.l.b16 %v536
        %v856 = vunpack.c.l.b16 %v537
        %v857 = vunpack.c.l.b16 %v538
        %v858 = vunpack.c.l.b16 %v539
        %v859 = vunpack.c.l.b16 %v540
        %v860 = vunpack.c.l.b16 %v541
        %v861 = vunpack.c.l.b16 %v542
        %v862 = vunpack.c.l.b16 %v543
        %v863 = vunpack.c.l.b16 %v544
        %v864 = vunpack.c.l.b16 %v545
        %v865 = vunpack.c.l.b16 %v546
        %v866 = vunpack.c.l.b16 %v547
        %v867 = vunpack.c.l.b16 %v548
        %v868 = vunpack.c.l.b16 %v549
        %v869 = vunpack.c.l.b16 %v550
        %v870 = vunpack.c.l.b16 %v551
        %v871 = vunpack.c.l.b16 %v552
        %v872 = vunpack.c.l.b16 %v553
        %v873 = vunpack.c.l.b16 %v554
        %v874 = vunpack.c.l.b16 %v555
        %v875 = vunpack.c.l.b16 %v556
        %v876 = vunpack.c.l.b16 %v557
        %v877 = vunpack.c.l.b16 %v558
        %v878 = vunpack.c.l.b16 %v559
        %v879 = vunpack.c.l.b16 %v560
        %v880 = vpack.c.b16 %v845, %v844
        %v881 = vpack.c.b16 %v847, %v846
        %v882 = vpack.c.b16 %v849, %v848
        %v883 = vpack.c.b16 %v851, %v850
        %v884 = vpack.c.b16 %v853, %v852
        %v885 = vpack.c.b16 %v855, %v854
        %v886 = vpack.c.b16 %v857, %v856
        %v887 = vpack.c.b16 %v859, %v858
        %v888 = vpack.c.b16 %v861, %v860
        %v889 = vpack.c.b16 %v863, %v862
        %v890 = vpack.c.b16 %v865, %v864
        %v891 = vpack.c.b16 %v867, %v866
        %v892 = vpack.c.b16 %v869, %v868
        %v893 = vpack.c.b16 %v871, %v870
        %v894 = vpack.c.b16 %v873, %v872
        %v895 = vpack.c.b16 %v875, %v874
        %v896 = vpack.c.b16 %v877, %v876
        %v897 = vpack.c.b16 %v879, %v878
        %vm916 = vcmask 261120
        %v918 = vsel %vm916, %v730, 0
        %v921 = vsel %vm916, %v733, 0
        %v924 = vsel %vm916, %v736, 0
        %v927 = vsel %vm916, %v739, 0
        %v930 = vsel %vm916, %v742, 0
        %v933 = vsel %vm916, %v745, 0
        %v936 = vsel %vm916, %v748, 0
        %v939 = vsel %vm916, %v751, 0
        %v942 = vsel %vm916, %v754, 0
        %v945 = vsel %vm916, %v757, 0
        %v948 = vsel %vm916, %v760, 0
        %v951 = vsel %vm916, %v763, 0
        %v954 = vsel %vm916, %v766, 0
        %v957 = vsel %vm916, %v769, 0
        %v960 = vsel %vm916, %v772, 0
        %v963 = vsel %vm916, %v775, 0
        %965 = vmatprep.subr.bf16.mxu0 0
        %966 = vmatpush1.bf16.msra.mxu0 %v887
        %967 = vmatprep.subr.bf16.mxu0 0
        %968 = vmatpush1.bf16.msra.mxu0 %v886
        %969 = vmatprep.subr.bf16.mxu0 0
        %970 = vmatpush1.bf16.msra.mxu0 %v885
        %971 = vmatprep.subr.bf16.mxu0 0
        %972 = vmatpush1.bf16.msra.mxu0 %v884
        %973 = vmatprep.subr.bf16.mxu0 0
        %974 = vmatpush1.bf16.msra.mxu0 %v883
        %975 = vmatprep.subr.bf16.mxu0 0
        %976 = vmatpush1.bf16.msra.mxu0 %v882
        %977 = vmatprep.subr.bf16.mxu0 0
        %978 = vmatpush1.bf16.msra.mxu0 %v881
        %979 = vmatprep.subr.bf16.mxu0 0
        %980 = vmatpush1.bf16.msra.mxu0 %v880
        %981 = vmatprep.subr.bf16.mxu0 0
        %982 = vmatpush2.bf16.msra.mxu0 %v895
        %983 = vmatprep.subr.bf16.mxu0 0
        %984 = vmatpush2.bf16.msra.mxu0 %v894
        %985 = vmatprep.subr.bf16.mxu0 0
        %986 = vmatpush2.bf16.msra.mxu0 %v893
        %987 = vmatprep.subr.bf16.mxu0 0
        %988 = vmatpush2.bf16.msra.mxu0 %v892
        %989 = vmatprep.subr.bf16.mxu0 0
        %990 = vmatpush2.bf16.msra.mxu0 %v891
        %991 = vmatprep.subr.bf16.mxu0 0
        %992 = vmatpush2.bf16.msra.mxu0 %v890
        %993 = vmatprep.subr.bf16.mxu0 0
        %994 = vmatpush2.bf16.msra.mxu0 %v889
        %995 = vmatprep.subr.bf16.mxu0 0
        %996 = vmatpush2.bf16.msra.mxu0 %v888
        %997 = vmatprep.mubr.bf16.mxu0 %v729
        %998 = vmatmul.mubr.bf16.gmra.mxu0 %v728
        %v999 = vpop.f32.mrf.mxu0
        %v1000 = vadd.f32 %v566, %v999
        %v1001 = vpop.f32.mrf.mxu0
        %v1002 = vpop.f32.mrf.mxu0
        %v1003 = vadd.f32 %v566, %v1002
        %v1004 = vpop.f32.mrf.mxu0
        %1005 = vmatprep.mubr.bf16.mxu0 %v732
        %1006 = vmatmul.mubr.bf16.gmra.mxu0 %v731
        %v1007 = vpop.f32.mrf.mxu0
        %v1008 = vadd.f32 %v566, %v1007
        %v1009 = vpop.f32.mrf.mxu0
        %v1010 = vpop.f32.mrf.mxu0
        %v1011 = vadd.f32 %v566, %v1010
        %v1012 = vpop.f32.mrf.mxu0
        %1013 = vmatprep.mubr.bf16.mxu0 %v735
        %1014 = vmatmul.mubr.bf16.gmra.mxu0 %v734
        %v1015 = vpop.f32.mrf.mxu0
        %v1016 = vadd.f32 %v566, %v1015
        %v1017 = vpop.f32.mrf.mxu0
        %v1018 = vpop.f32.mrf.mxu0
        %v1019 = vadd.f32 %v566, %v1018
        %v1020 = vpop.f32.mrf.mxu0
        %1021 = vmatprep.mubr.bf16.mxu0 %v738
        %1022 = vmatmul.mubr.bf16.gmra.mxu0 %v737
        %v1023 = vpop.f32.mrf.mxu0
        %v1024 = vadd.f32 %v566, %v1023
        %v1025 = vpop.f32.mrf.mxu0
        %v1026 = vpop.f32.mrf.mxu0
        %v1027 = vadd.f32 %v566, %v1026
        %v1028 = vpop.f32.mrf.mxu0
        %1029 = vmatprep.mubr.bf16.mxu0 %v741
        %1030 = vmatmul.mubr.bf16.gmra.mxu0 %v740
        %v1031 = vpop.f32.mrf.mxu0
        %v1032 = vadd.f32 %v566, %v1031
        %v1033 = vpop.f32.mrf.mxu0
        %v1034 = vpop.f32.mrf.mxu0
        %v1035 = vadd.f32 %v566, %v1034
        %v1036 = vpop.f32.mrf.mxu0
        %1037 = vmatprep.mubr.bf16.mxu0 %v744
        %1038 = vmatmul.mubr.bf16.gmra.mxu0 %v743
        %v1039 = vpop.f32.mrf.mxu0
        %v1040 = vadd.f32 %v566, %v1039
        %v1041 = vpop.f32.mrf.mxu0
        %v1042 = vpop.f32.mrf.mxu0
        %v1043 = vadd.f32 %v566, %v1042
        %v1044 = vpop.f32.mrf.mxu0
        %1045 = vmatprep.mubr.bf16.mxu0 %v747
        %1046 = vmatmul.mubr.bf16.gmra.mxu0 %v746
        %v1047 = vpop.f32.mrf.mxu0
        %v1048 = vadd.f32 %v566, %v1047
        %v1049 = vpop.f32.mrf.mxu0
        %v1050 = vpop.f32.mrf.mxu0
        %v1051 = vadd.f32 %v566, %v1050
        %v1052 = vpop.f32.mrf.mxu0
        %1053 = vmatprep.mubr.bf16.mxu0 %v750
        %1054 = vmatmul.mubr.bf16.gmra.mxu0 %v749
        %v1055 = vpop.f32.mrf.mxu0
        %v1056 = vadd.f32 %v566, %v1055
        %v1057 = vpop.f32.mrf.mxu0
        %v1058 = vpop.f32.mrf.mxu0
        %v1059 = vadd.f32 %v566, %v1058
        %v1060 = vpop.f32.mrf.mxu0
        %1061 = vmatprep.mubr.bf16.mxu0 %v753
        %1062 = vmatmul.mubr.bf16.gmra.mxu0 %v752
        %v1063 = vpop.f32.mrf.mxu0
        %v1064 = vadd.f32 %v566, %v1063
        %v1065 = vpop.f32.mrf.mxu0
        %v1066 = vpop.f32.mrf.mxu0
        %v1067 = vadd.f32 %v566, %v1066
        %v1068 = vpop.f32.mrf.mxu0
        %1069 = vmatprep.mubr.bf16.mxu0 %v756
        %1070 = vmatmul.mubr.bf16.gmra.mxu0 %v755
        %v1071 = vpop.f32.mrf.mxu0
        %v1072 = vadd.f32 %v566, %v1071
        %v1073 = vpop.f32.mrf.mxu0
        %v1074 = vpop.f32.mrf.mxu0
        %v1075 = vadd.f32 %v566, %v1074
        %v1076 = vpop.f32.mrf.mxu0
        %1077 = vmatprep.mubr.bf16.mxu0 %v759
        %1078 = vmatmul.mubr.bf16.gmra.mxu0 %v758
        %v1079 = vpop.f32.mrf.mxu0
        %v1080 = vadd.f32 %v566, %v1079
        %v1081 = vpop.f32.mrf.mxu0
        %v1082 = vpop.f32.mrf.mxu0
        %v1083 = vadd.f32 %v566, %v1082
        %v1084 = vpop.f32.mrf.mxu0
        %1085 = vmatprep.mubr.bf16.mxu0 %v762
        %1086 = vmatmul.mubr.bf16.gmra.mxu0 %v761
        %v1087 = vpop.f32.mrf.mxu0
        %v1088 = vadd.f32 %v566, %v1087
        %v1089 = vpop.f32.mrf.mxu0
        %v1090 = vpop.f32.mrf.mxu0
        %v1091 = vadd.f32 %v566, %v1090
        %v1092 = vpop.f32.mrf.mxu0
        %1093 = vmatprep.mubr.bf16.mxu0 %v765
        %1094 = vmatmul.mubr.bf16.gmra.mxu0 %v764
        %v1095 = vpop.f32.mrf.mxu0
        %v1096 = vadd.f32 %v566, %v1095
        %v1097 = vpop.f32.mrf.mxu0
        %v1098 = vpop.f32.mrf.mxu0
        %v1099 = vadd.f32 %v566, %v1098
        %v1100 = vpop.f32.mrf.mxu0
        %1101 = vmatprep.mubr.bf16.mxu0 %v768
        %1102 = vmatmul.mubr.bf16.gmra.mxu0 %v767
        %v1103 = vpop.f32.mrf.mxu0
        %v1104 = vadd.f32 %v566, %v1103
        %v1105 = vpop.f32.mrf.mxu0
        %v1106 = vpop.f32.mrf.mxu0
        %v1107 = vadd.f32 %v566, %v1106
        %v1108 = vpop.f32.mrf.mxu0
        %1109 = vmatprep.mubr.bf16.mxu0 %v771
        %1110 = vmatmul.mubr.bf16.gmra.mxu0 %v770
        %v1111 = vpop.f32.mrf.mxu0
        %v1112 = vadd.f32 %v566, %v1111
        %v1113 = vpop.f32.mrf.mxu0
        %v1114 = vpop.f32.mrf.mxu0
        %v1115 = vadd.f32 %v566, %v1114
        %v1116 = vpop.f32.mrf.mxu0
        %1117 = vmatprep.mubr.bf16.mxu0 %v774
        %1118 = vmatmul.mubr.bf16.gmra.mxu0 %v773
        %v1119 = vpop.f32.mrf.mxu0
        %v1120 = vadd.f32 %v566, %v1119
        %v1121 = vpop.f32.mrf.mxu0
        %v1122 = vpop.f32.mrf.mxu0
        %v1123 = vadd.f32 %v566, %v1122
        %v1124 = vpop.f32.mrf.mxu0
        %1125 = vdwg.mxu0
        %1126 = vmatprep.subr.bf16.mxu0 0
        %1127 = vmatpush1.bf16.msra.mxu0 0
        %1128 = vmatprep.subr.bf16.mxu0 0
        %1129 = vmatpush1.bf16.msra.mxu0 0
        %1130 = vmatprep.subr.bf16.mxu0 0
        %1131 = vmatpush1.bf16.msra.mxu0 0
        %1132 = vmatprep.subr.bf16.mxu0 0
        %1133 = vmatpush1.bf16.msra.mxu0 0
        %1134 = vmatprep.subr.bf16.mxu0 0
        %1135 = vmatpush1.bf16.msra.mxu0 0
        %1136 = vmatprep.subr.bf16.mxu0 0
        %1137 = vmatpush1.bf16.msra.mxu0 0
        %1138 = vmatprep.subr.bf16.mxu0 0
        %1139 = vmatpush1.bf16.msra.mxu0 %v897
        %1140 = vmatprep.subr.bf16.mxu0 0
        %1141 = vmatpush1.bf16.msra.mxu0 %v896
        %1142 = vmatprep.subr.bf16.mxu0 0
        %1143 = vmatpush2.bf16.msra.mxu0 0
        %1144 = vmatprep.subr.bf16.mxu0 0
        %1145 = vmatpush2.bf16.msra.mxu0 0
        %1146 = vmatprep.subr.bf16.mxu0 0
        %1147 = vmatpush2.bf16.msra.mxu0 0
        %1148 = vmatprep.subr.bf16.mxu0 0
        %1149 = vmatpush2.bf16.msra.mxu0 0
        %1150 = vmatprep.subr.bf16.mxu0 0
        %1151 = vmatpush2.bf16.msra.mxu0 0
        %1152 = vmatprep.subr.bf16.mxu0 0
        %1153 = vmatpush2.bf16.msra.mxu0 0
        %1154 = vmatprep.subr.bf16.mxu0 0
        %1155 = vmatpush2.bf16.msra.mxu0 0
        %1156 = vmatprep.subr.bf16.mxu0 0
        %1157 = vmatpush2.bf16.msra.mxu0 0
        %1158 = vmatprep.mubr.bf16.mxu0 0
        %1159 = vmatmul.mubr.bf16.gmra.mxu0 %v918
        %v1160 = vpop.f32.mrf.mxu0
        %v1161 = vadd.f32 %v1000, %v1160
        %v1162 = vpop.f32.mrf.mxu0
        %v1163 = vpop.f32.mrf.mxu0
        %v1164 = vadd.f32 %v1003, %v1163
        %v1165 = vpop.f32.mrf.mxu0
        %1166 = vmatprep.mubr.bf16.mxu0 0
        %1167 = vmatmul.mubr.bf16.gmra.mxu0 %v921
        %v1168 = vpop.f32.mrf.mxu0
        %v1169 = vadd.f32 %v1008, %v1168
        %v1170 = vpop.f32.mrf.mxu0
        %v1171 = vpop.f32.mrf.mxu0
        %v1172 = vadd.f32 %v1011, %v1171
        %v1173 = vpop.f32.mrf.mxu0
        %1174 = vmatprep.mubr.bf16.mxu0 0
        %1175 = vmatmul.mubr.bf16.gmra.mxu0 %v924
        %v1176 = vpop.f32.mrf.mxu0
        %v1177 = vadd.f32 %v1016, %v1176
        %v1178 = vpop.f32.mrf.mxu0
        %v1179 = vpop.f32.mrf.mxu0
        %v1180 = vadd.f32 %v1019, %v1179
        %v1181 = vpop.f32.mrf.mxu0
        %1182 = vmatprep.mubr.bf16.mxu0 0
        %1183 = vmatmul.mubr.bf16.gmra.mxu0 %v927
        %v1184 = vpop.f32.mrf.mxu0
        %v1185 = vadd.f32 %v1024, %v1184
        %v1186 = vpop.f32.mrf.mxu0
        %v1187 = vpop.f32.mrf.mxu0
        %v1188 = vadd.f32 %v1027, %v1187
        %v1189 = vpop.f32.mrf.mxu0
        %1190 = vmatprep.mubr.bf16.mxu0 0
        %1191 = vmatmul.mubr.bf16.gmra.mxu0 %v930
        %v1192 = vpop.f32.mrf.mxu0
        %v1193 = vadd.f32 %v1032, %v1192
        %v1194 = vpop.f32.mrf.mxu0
        %v1195 = vpop.f32.mrf.mxu0
        %v1196 = vadd.f32 %v1035, %v1195
        %v1197 = vpop.f32.mrf.mxu0
        %1198 = vmatprep.mubr.bf16.mxu0 0
        %1199 = vmatmul.mubr.bf16.gmra.mxu0 %v933
        %v1200 = vpop.f32.mrf.mxu0
        %v1201 = vadd.f32 %v1040, %v1200
        %v1202 = vpop.f32.mrf.mxu0
        %v1203 = vpop.f32.mrf.mxu0
        %v1204 = vadd.f32 %v1043, %v1203
        %v1205 = vpop.f32.mrf.mxu0
        %1206 = vmatprep.mubr.bf16.mxu0 0
        %1207 = vmatmul.mubr.bf16.gmra.mxu0 %v936
        %v1208 = vpop.f32.mrf.mxu0
        %v1209 = vadd.f32 %v1048, %v1208
        %v1210 = vpop.f32.mrf.mxu0
        %v1211 = vpop.f32.mrf.mxu0
        %v1212 = vadd.f32 %v1051, %v1211
        %v1213 = vpop.f32.mrf.mxu0
        %1214 = vmatprep.mubr.bf16.mxu0 0
        %1215 = vmatmul.mubr.bf16.gmra.mxu0 %v939
        %v1216 = vpop.f32.mrf.mxu0
        %v1217 = vadd.f32 %v1056, %v1216
        %v1218 = vpop.f32.mrf.mxu0
        %v1219 = vpop.f32.mrf.mxu0
        %v1220 = vadd.f32 %v1059, %v1219
        %v1221 = vpop.f32.mrf.mxu0
        %1222 = vmatprep.mubr.bf16.mxu0 0
        %1223 = vmatmul.mubr.bf16.gmra.mxu0 %v942
        %v1224 = vpop.f32.mrf.mxu0
        %v1225 = vadd.f32 %v1064, %v1224
        %v1226 = vpop.f32.mrf.mxu0
        %v1227 = vpop.f32.mrf.mxu0
        %v1228 = vadd.f32 %v1067, %v1227
        %v1229 = vpop.f32.mrf.mxu0
        %1230 = vmatprep.mubr.bf16.mxu0 0
        %1231 = vmatmul.mubr.bf16.gmra.mxu0 %v945
        %v1232 = vpop.f32.mrf.mxu0
        %v1233 = vadd.f32 %v1072, %v1232
        %v1234 = vpop.f32.mrf.mxu0
        %v1235 = vpop.f32.mrf.mxu0
        %v1236 = vadd.f32 %v1075, %v1235
        %v1237 = vpop.f32.mrf.mxu0
        %1238 = vmatprep.mubr.bf16.mxu0 0
        %1239 = vmatmul.mubr.bf16.gmra.mxu0 %v948
        %v1240 = vpop.f32.mrf.mxu0
        %v1241 = vadd.f32 %v1080, %v1240
        %v1242 = vpop.f32.mrf.mxu0
        %v1243 = vpop.f32.mrf.mxu0
        %v1244 = vadd.f32 %v1083, %v1243
        %v1245 = vpop.f32.mrf.mxu0
        %1246 = vmatprep.mubr.bf16.mxu0 0
        %1247 = vmatmul.mubr.bf16.gmra.mxu0 %v951
        %v1248 = vpop.f32.mrf.mxu0
        %v1249 = vadd.f32 %v1088, %v1248
        %v1250 = vpop.f32.mrf.mxu0
        %v1251 = vpop.f32.mrf.mxu0
        %v1252 = vadd.f32 %v1091, %v1251
        %v1253 = vpop.f32.mrf.mxu0
        %1254 = vmatprep.mubr.bf16.mxu0 0
        %1255 = vmatmul.mubr.bf16.gmra.mxu0 %v954
        %v1256 = vpop.f32.mrf.mxu0
        %v1257 = vadd.f32 %v1096, %v1256
        %v1258 = vpop.f32.mrf.mxu0
        %v1259 = vpop.f32.mrf.mxu0
        %v1260 = vadd.f32 %v1099, %v1259
        %v1261 = vpop.f32.mrf.mxu0
        %1262 = vmatprep.mubr.bf16.mxu0 0
        %1263 = vmatmul.mubr.bf16.gmra.mxu0 %v957
        %v1264 = vpop.f32.mrf.mxu0
        %v1265 = vadd.f32 %v1104, %v1264
        %v1266 = vpop.f32.mrf.mxu0
        %v1267 = vpop.f32.mrf.mxu0
        %v1268 = vadd.f32 %v1107, %v1267
        %v1269 = vpop.f32.mrf.mxu0
        %1270 = vmatprep.mubr.bf16.mxu0 0
        %1271 = vmatmul.mubr.bf16.gmra.mxu0 %v960
        %v1272 = vpop.f32.mrf.mxu0
        %v1273 = vadd.f32 %v1112, %v1272
        %v1274 = vpop.f32.mrf.mxu0
        %v1275 = vpop.f32.mrf.mxu0
        %v1276 = vadd.f32 %v1115, %v1275
        %v1277 = vpop.f32.mrf.mxu0
        %1278 = vmatprep.mubr.bf16.mxu0 0
        %1279 = vmatmul.mubr.bf16.gmra.mxu0 %v963
        %v1280 = vpop.f32.mrf.mxu0
        %v1281 = vadd.f32 %v1120, %v1280
        %v1282 = vpop.f32.mrf.mxu0
        %v1283 = vpop.f32.mrf.mxu0
        %v1284 = vadd.f32 %v1123, %v1283
        %v1285 = vpop.f32.mrf.mxu0
        %1286 = vdwg.mxu0
        %v1287 = vmax.f32 %v1161, 0.0
        %v1288 = vmax.f32 %v1164, 0.0
        %v1289 = vmax.f32 %v1169, 0.0
        %v1290 = vmax.f32 %v1172, 0.0
        %v1291 = vmax.f32 %v1177, 0.0
        %v1292 = vmax.f32 %v1180, 0.0
        %v1293 = vmax.f32 %v1185, 0.0
        %v1294 = vmax.f32 %v1188, 0.0
        %v1295 = vmax.f32 %v1193, 0.0
        %v1296 = vmax.f32 %v1196, 0.0
        %v1297 = vmax.f32 %v1201, 0.0
        %v1298 = vmax.f32 %v1204, 0.0
        %v1299 = vmax.f32 %v1209, 0.0
        %v1300 = vmax.f32 %v1212, 0.0
        %v1301 = vmax.f32 %v1217, 0.0
        %v1302 = vmax.f32 %v1220, 0.0
        %v1303 = vmax.f32 %v1225, 0.0
        %v1304 = vmax.f32 %v1228, 0.0
        %v1305 = vmax.f32 %v1233, 0.0
        %v1306 = vmax.f32 %v1236, 0.0
        %v1307 = vmax.f32 %v1241, 0.0
        %v1308 = vmax.f32 %v1244, 0.0
        %v1309 = vmax.f32 %v1249, 0.0
        %v1310 = vmax.f32 %v1252, 0.0
        %v1311 = vmax.f32 %v1257, 0.0
        %v1312 = vmax.f32 %v1260, 0.0
        %v1313 = vmax.f32 %v1265, 0.0
        %v1314 = vmax.f32 %v1268, 0.0
        %v1315 = vmax.f32 %v1273, 0.0
        %v1316 = vmax.f32 %v1276, 0.0
        %v1317 = vmax.f32 %v1281, 0.0
        %v1318 = vmax.f32 %v1284, 0.0
        %v1319 = vpack.c.bf16 %v1288, %v1287
        %v1320 = vpack.c.bf16 %v1290, %v1289
        %v1321 = vpack.c.bf16 %v1292, %v1291
        %v1322 = vpack.c.bf16 %v1294, %v1293
        %v1323 = vpack.c.bf16 %v1296, %v1295
        %v1324 = vpack.c.bf16 %v1298, %v1297
        %v1325 = vpack.c.bf16 %v1300, %v1299
        %v1326 = vpack.c.bf16 %v1302, %v1301
        %v1327 = vpack.c.bf16 %v1304, %v1303
        %v1328 = vpack.c.bf16 %v1306, %v1305
        %v1329 = vpack.c.bf16 %v1308, %v1307
        %v1330 = vpack.c.bf16 %v1310, %v1309
        %v1331 = vpack.c.bf16 %v1312, %v1311
        %v1332 = vpack.c.bf16 %v1314, %v1313
        %v1333 = vpack.c.bf16 %v1316, %v1315
        %v1334 = vpack.c.bf16 %v1318, %v1317
        %v1335 = vld [vmem:[%s3] sm:$0xf]
        %v1336 = vld [vmem:[%s3 + $0x4] sm:$0xf]
        %v1337 = vld [vmem:[%s3 + $0x8] sm:$0xf]
        %v1338 = vld [vmem:[%s3 + $0xc] sm:$0xf]
        %v1339 = vld [vmem:[%s4] sm:$0x1]
        %v1341 = vlaneseq
        %v1342 = vshrl.u32 %v1341, 7
        %v1343 = vsub.s32 0, %v1342
        %v1344 = vrot.slane %v1339, %v1343
        %v1350 = vunpack.c.l.b16 %v1335
        %v1351 = vunpack.c.l.b16 %v1336
        %v1352 = vunpack.c.l.b16 %v1337
        %v1353 = vunpack.c.l.b16 %v1338
        %v1354 = vpack.c.b16 %v1351, %v1350
        %v1355 = vpack.c.b16 %v1353, %v1352
        %v1359 = vsel %vm916, %v1319, 0
        %v1362 = vsel %vm916, %v1320, 0
        %v1365 = vsel %vm916, %v1321, 0
        %v1368 = vsel %vm916, %v1322, 0
        %v1371 = vsel %vm916, %v1323, 0
        %v1374 = vsel %vm916, %v1324, 0
        %v1377 = vsel %vm916, %v1325, 0
        %v1380 = vsel %vm916, %v1326, 0
        %v1383 = vsel %vm916, %v1327, 0
        %v1386 = vsel %vm916, %v1328, 0
        %v1389 = vsel %vm916, %v1329, 0
        %v1392 = vsel %vm916, %v1330, 0
        %v1395 = vsel %vm916, %v1331, 0
        %v1398 = vsel %vm916, %v1332, 0
        %v1401 = vsel %vm916, %v1333, 0
        %v1404 = vsel %vm916, %v1334, 0
        %1406 = vmatprep.subr.bf16.mxu0 0
        %1407 = vmatpush1.bf16.msra.mxu0 0
        %1408 = vmatprep.subr.bf16.mxu0 0
        %1409 = vmatpush1.bf16.msra.mxu0 0
        %1410 = vmatprep.subr.bf16.mxu0 0
        %1411 = vmatpush1.bf16.msra.mxu0 0
        %1412 = vmatprep.subr.bf16.mxu0 0
        %1413 = vmatpush1.bf16.msra.mxu0 0
        %1414 = vmatprep.subr.bf16.mxu0 0
        %1415 = vmatpush1.bf16.msra.mxu0 0
        %1416 = vmatprep.subr.bf16.mxu0 0
        %1417 = vmatpush1.bf16.msra.mxu0 0
        %1418 = vmatprep.subr.bf16.mxu0 0
        %1419 = vmatpush1.bf16.msra.mxu0 %v1355
        %1420 = vmatprep.subr.bf16.mxu0 0
        %1421 = vmatpush1.bf16.msra.mxu0 %v1354
        %1422 = vmatprep.subr.bf16.mxu0 0
        %1423 = vmatpush2.bf16.msra.mxu0 0
        %1424 = vmatprep.subr.bf16.mxu0 0
        %1425 = vmatpush2.bf16.msra.mxu0 0
        %1426 = vmatprep.subr.bf16.mxu0 0
        %1427 = vmatpush2.bf16.msra.mxu0 0
        %1428 = vmatprep.subr.bf16.mxu0 0
        %1429 = vmatpush2.bf16.msra.mxu0 0
        %1430 = vmatprep.subr.bf16.mxu0 0
        %1431 = vmatpush2.bf16.msra.mxu0 0
        %1432 = vmatprep.subr.bf16.mxu0 0
        %1433 = vmatpush2.bf16.msra.mxu0 0
        %1434 = vmatprep.subr.bf16.mxu0 0
        %1435 = vmatpush2.bf16.msra.mxu0 0
        %1436 = vmatprep.subr.bf16.mxu0 0
        %1437 = vmatpush2.bf16.msra.mxu0 0
        %1438 = vmatprep.mubr.bf16.mxu0 0
        %1439 = vmatmul.mubr.bf16.gmra.mxu0 %v1359
        %v1440 = vpop.f32.mrf.mxu0
        %v1441 = vadd.f32 %v1344, %v1440
        %v1442 = vpop.f32.mrf.mxu0
        %v1443 = vpop.f32.mrf.mxu0
        %v1444 = vadd.f32 %v1344, %v1443
        %v1445 = vpop.f32.mrf.mxu0
        %1446 = vmatprep.mubr.bf16.mxu0 0
        %1447 = vmatmul.mubr.bf16.gmra.mxu0 %v1362
        %v1448 = vpop.f32.mrf.mxu0
        %v1449 = vadd.f32 %v1344, %v1448
        %v1450 = vpop.f32.mrf.mxu0
        %v1451 = vpop.f32.mrf.mxu0
        %v1452 = vadd.f32 %v1344, %v1451
        %v1453 = vpop.f32.mrf.mxu0
        %1454 = vmatprep.mubr.bf16.mxu0 0
        %1455 = vmatmul.mubr.bf16.gmra.mxu0 %v1365
        %v1456 = vpop.f32.mrf.mxu0
        %v1457 = vadd.f32 %v1344, %v1456
        %v1458 = vpop.f32.mrf.mxu0
        %v1459 = vpop.f32.mrf.mxu0
        %v1460 = vadd.f32 %v1344, %v1459
        %v1461 = vpop.f32.mrf.mxu0
        %1462 = vmatprep.mubr.bf16.mxu0 0
        %1463 = vmatmul.mubr.bf16.gmra.mxu0 %v1368
        %v1464 = vpop.f32.mrf.mxu0
        %v1465 = vadd.f32 %v1344, %v1464
        %v1466 = vpop.f32.mrf.mxu0
        %v1467 = vpop.f32.mrf.mxu0
        %v1468 = vadd.f32 %v1344, %v1467
        %v1469 = vpop.f32.mrf.mxu0
        %1470 = vmatprep.mubr.bf16.mxu0 0
        %1471 = vmatmul.mubr.bf16.gmra.mxu0 %v1371
        %v1472 = vpop.f32.mrf.mxu0
        %v1473 = vadd.f32 %v1344, %v1472
        %v1474 = vpop.f32.mrf.mxu0
        %v1475 = vpop.f32.mrf.mxu0
        %v1476 = vadd.f32 %v1344, %v1475
        %v1477 = vpop.f32.mrf.mxu0
        %1478 = vmatprep.mubr.bf16.mxu0 0
        %1479 = vmatmul.mubr.bf16.gmra.mxu0 %v1374
        %v1480 = vpop.f32.mrf.mxu0
        %v1481 = vadd.f32 %v1344, %v1480
        %v1482 = vpop.f32.mrf.mxu0
        %v1483 = vpop.f32.mrf.mxu0
        %v1484 = vadd.f32 %v1344, %v1483
        %v1485 = vpop.f32.mrf.mxu0
        %1486 = vmatprep.mubr.bf16.mxu0 0
        %1487 = vmatmul.mubr.bf16.gmra.mxu0 %v1377
        %v1488 = vpop.f32.mrf.mxu0
        %v1489 = vadd.f32 %v1344, %v1488
        %v1490 = vpop.f32.mrf.mxu0
        %v1491 = vpop.f32.mrf.mxu0
        %v1492 = vadd.f32 %v1344, %v1491
        %v1493 = vpop.f32.mrf.mxu0
        %1494 = vmatprep.mubr.bf16.mxu0 0
        %1495 = vmatmul.mubr.bf16.gmra.mxu0 %v1380
        %v1496 = vpop.f32.mrf.mxu0
        %v1497 = vadd.f32 %v1344, %v1496
        %v1498 = vpop.f32.mrf.mxu0
        %v1499 = vpop.f32.mrf.mxu0
        %v1500 = vadd.f32 %v1344, %v1499
        %v1501 = vpop.f32.mrf.mxu0
        %1502 = vmatprep.mubr.bf16.mxu0 0
        %1503 = vmatmul.mubr.bf16.gmra.mxu0 %v1383
        %v1504 = vpop.f32.mrf.mxu0
        %v1505 = vadd.f32 %v1344, %v1504
        %v1506 = vpop.f32.mrf.mxu0
        %v1507 = vpop.f32.mrf.mxu0
        %v1508 = vadd.f32 %v1344, %v1507
        %v1509 = vpop.f32.mrf.mxu0
        %1510 = vmatprep.mubr.bf16.mxu0 0
        %1511 = vmatmul.mubr.bf16.gmra.mxu0 %v1386
        %v1512 = vpop.f32.mrf.mxu0
        %v1513 = vadd.f32 %v1344, %v1512
        %v1514 = vpop.f32.mrf.mxu0
        %v1515 = vpop.f32.mrf.mxu0
        %v1516 = vadd.f32 %v1344, %v1515
        %v1517 = vpop.f32.mrf.mxu0
        %1518 = vmatprep.mubr.bf16.mxu0 0
        %1519 = vmatmul.mubr.bf16.gmra.mxu0 %v1389
        %v1520 = vpop.f32.mrf.mxu0
        %v1521 = vadd.f32 %v1344, %v1520
        %v1522 = vpop.f32.mrf.mxu0
        %v1523 = vpop.f32.mrf.mxu0
        %v1524 = vadd.f32 %v1344, %v1523
        %v1525 = vpop.f32.mrf.mxu0
        %1526 = vmatprep.mubr.bf16.mxu0 0
        %1527 = vmatmul.mubr.bf16.gmra.mxu0 %v1392
        %v1528 = vpop.f32.mrf.mxu0
        %v1529 = vadd.f32 %v1344, %v1528
        %v1530 = vpop.f32.mrf.mxu0
        %v1531 = vpop.f32.mrf.mxu0
        %v1532 = vadd.f32 %v1344, %v1531
        %v1533 = vpop.f32.mrf.mxu0
        %1534 = vmatprep.mubr.bf16.mxu0 0
        %1535 = vmatmul.mubr.bf16.gmra.mxu0 %v1395
        %v1536 = vpop.f32.mrf.mxu0
        %v1537 = vadd.f32 %v1344, %v1536
        %v1538 = vpop.f32.mrf.mxu0
        %v1539 = vpop.f32.mrf.mxu0
        %v1540 = vadd.f32 %v1344, %v1539
        %v1541 = vpop.f32.mrf.mxu0
        %1542 = vmatprep.mubr.bf16.mxu0 0
        %1543 = vmatmul.mubr.bf16.gmra.mxu0 %v1398
        %v1544 = vpop.f32.mrf.mxu0
        %v1545 = vadd.f32 %v1344, %v1544
        %v1546 = vpop.f32.mrf.mxu0
        %v1547 = vpop.f32.mrf.mxu0
        %v1548 = vadd.f32 %v1344, %v1547
        %v1549 = vpop.f32.mrf.mxu0
        %1550 = vmatprep.mubr.bf16.mxu0 0
        %1551 = vmatmul.mubr.bf16.gmra.mxu0 %v1401
        %v1552 = vpop.f32.mrf.mxu0
        %v1553 = vadd.f32 %v1344, %v1552
        %v1554 = vpop.f32.mrf.mxu0
        %v1555 = vpop.f32.mrf.mxu0
        %v1556 = vadd.f32 %v1344, %v1555
        %v1557 = vpop.f32.mrf.mxu0
        %1558 = vmatprep.mubr.bf16.mxu0 0
        %1559 = vmatmul.mubr.bf16.gmra.mxu0 %v1404
        %v1560 = vpop.f32.mrf.mxu0
        %v1561 = vadd.f32 %v1344, %v1560
        %v1562 = vpop.f32.mrf.mxu0
        %v1563 = vpop.f32.mrf.mxu0
        %v1564 = vadd.f32 %v1344, %v1563
        %v1565 = vpop.f32.mrf.mxu0
        %1566 = vdwg.mxu0
        %1567 = vxpose.xlu0.b32.start [1/16] %v1441, 128
        %1568 = vxpose.xlu0.b32.cont [2/16] %v1444, 128
        %1569 = vxpose.xlu0.b32.cont [3/16] %v1449, 128
        %1570 = vxpose.xlu0.b32.cont [4/16] %v1452, 128
        %1571 = vxpose.xlu0.b32.cont [5/16] %v1457, 128
        %1572 = vxpose.xlu0.b32.cont [6/16] %v1460, 128
        %1573 = vxpose.xlu0.b32.cont [7/16] %v1465, 128
        %1574 = vxpose.xlu0.b32.cont [8/16] %v1468, 128
        %1575 = vxpose.xlu0.b32.cont [9/16] %v1473, 128
        %1576 = vxpose.xlu0.b32.cont [10/16] %v1476, 128
        %1577 = vxpose.xlu0.b32.cont [11/16] %v1481, 128
        %1578 = vxpose.xlu0.b32.cont [12/16] %v1484, 128
        %1579 = vxpose.xlu0.b32.cont [13/16] %v1489, 128
        %1580 = vxpose.xlu0.b32.cont [14/16] %v1492, 128
        %1581 = vxpose.xlu0.b32.cont [15/16] %v1497, 128
        %1582 = vxpose.xlu0.b32.end [16/16] %v1500, 128
        %v1583 = vpop.trf.xlu0
        %v1584 = vpop.trf.xlu0
        %v1585 = vpop.trf.xlu0
        %v1586 = vpop.trf.xlu0
        %v1587 = vpop.trf.xlu0
        %v1588 = vpop.trf.xlu0
        %v1589 = vpop.trf.xlu0
        %v1590 = vpop.trf.xlu0
        %v1591 = vpop.trf.xlu0
        %v1592 = vpop.trf.xlu0
        %v1593 = vpop.trf.xlu0
        %v1594 = vpop.trf.xlu0
        %v1595 = vpop.trf.xlu0
        %v1596 = vpop.trf.xlu0
        %v1597 = vpop.trf.xlu0
        %v1598 = vpop.trf.xlu0
        %1599 = vxpose.xlu0.b32.start [1/16] %v1505, 128
        %1600 = vxpose.xlu0.b32.cont [2/16] %v1508, 128
        %1601 = vxpose.xlu0.b32.cont [3/16] %v1513, 128
        %1602 = vxpose.xlu0.b32.cont [4/16] %v1516, 128
        %1603 = vxpose.xlu0.b32.cont [5/16] %v1521, 128
        %1604 = vxpose.xlu0.b32.cont [6/16] %v1524, 128
        %1605 = vxpose.xlu0.b32.cont [7/16] %v1529, 128
        %1606 = vxpose.xlu0.b32.cont [8/16] %v1532, 128
        %1607 = vxpose.xlu0.b32.cont [9/16] %v1537, 128
        %1608 = vxpose.xlu0.b32.cont [10/16] %v1540, 128
        %1609 = vxpose.xlu0.b32.cont [11/16] %v1545, 128
        %1610 = vxpose.xlu0.b32.cont [12/16] %v1548, 128
        %1611 = vxpose.xlu0.b32.cont [13/16] %v1553, 128
        %1612 = vxpose.xlu0.b32.cont [14/16] %v1556, 128
        %1613 = vxpose.xlu0.b32.cont [15/16] %v1561, 128
        %1614 = vxpose.xlu0.b32.end [16/16] %v1564, 128
        %v1615 = vpop.trf.xlu0
        %v1616 = vpop.trf.xlu0
        %v1617 = vpop.trf.xlu0
        %v1618 = vpop.trf.xlu0
        %v1619 = vpop.trf.xlu0
        %v1620 = vpop.trf.xlu0
        %v1621 = vpop.trf.xlu0
        %v1622 = vpop.trf.xlu0
        %v1623 = vpop.trf.xlu0
        %v1624 = vpop.trf.xlu0
        %v1625 = vpop.trf.xlu0
        %v1626 = vpop.trf.xlu0
        %v1627 = vpop.trf.xlu0
        %v1628 = vpop.trf.xlu0
        %v1629 = vpop.trf.xlu0
        %v1630 = vpop.trf.xlu0
        %v1633 = vcombine.low %v1583, %v1615
        %1635 = vst [vmem:[%s439] sm:$0xff] %v1633
        %v1636 = vld [vmem:[%s5] sm:$0xf]
        %v1637 = vld [vmem:[%s5 + $0x4] sm:$0xf]
        %v1638 = vld [vmem:[%s5 + $0x8] sm:$0xf]
        %v1639 = vld [vmem:[%s5 + $0xc] sm:$0xf]
        %v1640 = vld [vmem:[%s5 + $0x10] sm:$0xf]
        %v1641 = vld [vmem:[%s5 + $0x14] sm:$0xf]
        %v1642 = vld [vmem:[%s5 + $0x18] sm:$0xf]
        %v1643 = vld [vmem:[%s5 + $0x1c] sm:$0xf]
        %v1644 = vld [vmem:[%s5 + $0x20] sm:$0xf]
        %v1645 = vld [vmem:[%s5 + $0x24] sm:$0xf]
        %v1646 = vld [vmem:[%s5 + $0x28] sm:$0xf]
        %v1647 = vld [vmem:[%s5 + $0x2c] sm:$0xf]
        %v1648 = vld [vmem:[%s5 + $0x30] sm:$0xf]
        %v1649 = vld [vmem:[%s5 + $0x34] sm:$0xf]
        %v1650 = vld [vmem:[%s5 + $0x38] sm:$0xf]
        %v1651 = vld [vmem:[%s5 + $0x3c] sm:$0xf]
        %v1652 = vld [vmem:[%s5 + $0x40] sm:$0xf]
        %v1653 = vld [vmem:[%s5 + $0x44] sm:$0xf]
        %v1654 = vld [vmem:[%s5 + $0x48] sm:$0xf]
        %v1655 = vld [vmem:[%s5 + $0x4c] sm:$0xf]
        %v1656 = vld [vmem:[%s5 + $0x50] sm:$0xf]
        %v1657 = vld [vmem:[%s5 + $0x54] sm:$0xf]
        %v1658 = vld [vmem:[%s5 + $0x58] sm:$0xf]
        %v1659 = vld [vmem:[%s5 + $0x5c] sm:$0xf]
        %v1660 = vld [vmem:[%s5 + $0x60] sm:$0xf]
        %v1661 = vld [vmem:[%s5 + $0x64] sm:$0xf]
        %v1662 = vld [vmem:[%s5 + $0x68] sm:$0xf]
        %v1663 = vld [vmem:[%s5 + $0x6c] sm:$0xf]
        %v1664 = vld [vmem:[%s5 + $0x70] sm:$0xf]
        %v1665 = vld [vmem:[%s5 + $0x74] sm:$0xf]
        %v1666 = vld [vmem:[%s5 + $0x78] sm:$0xf]
        %v1667 = vld [vmem:[%s5 + $0x7c] sm:$0xf]
        %v1668 = vld [vmem:[%s5 + $0x80] sm:$0xf]
        %v1669 = vld [vmem:[%s5 + $0x84] sm:$0xf]
        %v1670 = vld [vmem:[%s5 + $0x88] sm:$0xf]
        %v1671 = vld [vmem:[%s5 + $0x8c] sm:$0xf]
        %v1672 = vld [vmem:[%s6] sm:$0x1]
        %v1674 = vlaneseq
        %v1675 = vshrl.u32 %v1674, 7
        %v1676 = vsub.s32 0, %v1675
        %v1677 = vrot.slane %v1672, %v1676
        %v1715 = vunpack.c.l.b16 %v1636
        %v1716 = vunpack.c.l.b16 %v1637
        %v1717 = vunpack.c.l.b16 %v1638
        %v1718 = vunpack.c.l.b16 %v1639
        %v1719 = vunpack.c.l.b16 %v1640
        %v1720 = vunpack.c.l.b16 %v1641
        %v1721 = vunpack.c.l.b16 %v1642
        %v1722 = vunpack.c.l.b16 %v1643
        %v1723 = vunpack.c.l.b16 %v1644
        %v1724 = vunpack.c.l.b16 %v1645
        %v1725 = vunpack.c.l.b16 %v1646
        %v1726 = vunpack.c.l.b16 %v1647
        %v1727 = vunpack.c.l.b16 %v1648
        %v1728 = vunpack.c.l.b16 %v1649
        %v1729 = vunpack.c.l.b16 %v1650
        %v1730 = vunpack.c.l.b16 %v1651
        %v1731 = vunpack.c.l.b16 %v1652
        %v1732 = vunpack.c.l.b16 %v1653
        %v1733 = vunpack.c.l.b16 %v1654
        %v1734 = vunpack.c.l.b16 %v1655
        %v1735 = vunpack.c.l.b16 %v1656
        %v1736 = vunpack.c.l.b16 %v1657
        %v1737 = vunpack.c.l.b16 %v1658
        %v1738 = vunpack.c.l.b16 %v1659
        %v1739 = vunpack.c.l.b16 %v1660
        %v1740 = vunpack.c.l.b16 %v1661
        %v1741 = vunpack.c.l.b16 %v1662
        %v1742 = vunpack.c.l.b16 %v1663
        %v1743 = vunpack.c.l.b16 %v1664
        %v1744 = vunpack.c.l.b16 %v1665
        %v1745 = vunpack.c.l.b16 %v1666
        %v1746 = vunpack.c.l.b16 %v1667
        %v1747 = vunpack.c.l.b16 %v1668
        %v1748 = vunpack.c.l.b16 %v1669
        %v1749 = vunpack.c.l.b16 %v1670
        %v1750 = vunpack.c.l.b16 %v1671
        %v1751 = vpack.c.b16 %v1716, %v1715
        %v1752 = vpack.c.b16 %v1718, %v1717
        %v1753 = vpack.c.b16 %v1720, %v1719
        %v1754 = vpack.c.b16 %v1722, %v1721
        %v1755 = vpack.c.b16 %v1724, %v1723
        %v1756 = vpack.c.b16 %v1726, %v1725
        %v1757 = vpack.c.b16 %v1728, %v1727
        %v1758 = vpack.c.b16 %v1730, %v1729
        %v1759 = vpack.c.b16 %v1732, %v1731
        %v1760 = vpack.c.b16 %v1734, %v1733
        %v1761 = vpack.c.b16 %v1736, %v1735
        %v1762 = vpack.c.b16 %v1738, %v1737
        %v1763 = vpack.c.b16 %v1740, %v1739
        %v1764 = vpack.c.b16 %v1742, %v1741
        %v1765 = vpack.c.b16 %v1744, %v1743
        %v1766 = vpack.c.b16 %v1746, %v1745
        %v1767 = vpack.c.b16 %v1748, %v1747
        %v1768 = vpack.c.b16 %v1750, %v1749
        %1787 = vmatprep.subr.bf16.mxu0 0
        %1788 = vmatpush1.bf16.msra.mxu0 %v1758
        %1789 = vmatprep.subr.bf16.mxu0 0
        %1790 = vmatpush1.bf16.msra.mxu0 %v1757
        %1791 = vmatprep.subr.bf16.mxu0 0
        %1792 = vmatpush1.bf16.msra.mxu0 %v1756
        %1793 = vmatprep.subr.bf16.mxu0 0
        %1794 = vmatpush1.bf16.msra.mxu0 %v1755
        %1795 = vmatprep.subr.bf16.mxu0 0
        %1796 = vmatpush1.bf16.msra.mxu0 %v1754
        %1797 = vmatprep.subr.bf16.mxu0 0
        %1798 = vmatpush1.bf16.msra.mxu0 %v1753
        %1799 = vmatprep.subr.bf16.mxu0 0
        %1800 = vmatpush1.bf16.msra.mxu0 %v1752
        %1801 = vmatprep.subr.bf16.mxu0 0
        %1802 = vmatpush1.bf16.msra.mxu0 %v1751
        %1803 = vmatprep.subr.bf16.mxu0 0
        %1804 = vmatpush2.bf16.msra.mxu0 %v1766
        %1805 = vmatprep.subr.bf16.mxu0 0
        %1806 = vmatpush2.bf16.msra.mxu0 %v1765
        %1807 = vmatprep.subr.bf16.mxu0 0
        %1808 = vmatpush2.bf16.msra.mxu0 %v1764
        %1809 = vmatprep.subr.bf16.mxu0 0
        %1810 = vmatpush2.bf16.msra.mxu0 %v1763
        %1811 = vmatprep.subr.bf16.mxu0 0
        %1812 = vmatpush2.bf16.msra.mxu0 %v1762
        %1813 = vmatprep.subr.bf16.mxu0 0
        %1814 = vmatpush2.bf16.msra.mxu0 %v1761
        %1815 = vmatprep.subr.bf16.mxu0 0
        %1816 = vmatpush2.bf16.msra.mxu0 %v1760
        %1817 = vmatprep.subr.bf16.mxu0 0
        %1818 = vmatpush2.bf16.msra.mxu0 %v1759
        %1819 = vmatprep.mubr.bf16.mxu0 %v729
        %1820 = vmatmul.mubr.bf16.gmra.mxu0 %v728
        %v1821 = vpop.f32.mrf.mxu0
        %v1822 = vadd.f32 %v1677, %v1821
        %v1823 = vpop.f32.mrf.mxu0
        %v1824 = vpop.f32.mrf.mxu0
        %v1825 = vadd.f32 %v1677, %v1824
        %v1826 = vpop.f32.mrf.mxu0
        %1827 = vmatprep.mubr.bf16.mxu0 %v732
        %1828 = vmatmul.mubr.bf16.gmra.mxu0 %v731
        %v1829 = vpop.f32.mrf.mxu0
        %v1830 = vadd.f32 %v1677, %v1829
        %v1831 = vpop.f32.mrf.mxu0
        %v1832 = vpop.f32.mrf.mxu0
        %v1833 = vadd.f32 %v1677, %v1832
        %v1834 = vpop.f32.mrf.mxu0
        %1835 = vmatprep.mubr.bf16.mxu0 %v735
        %1836 = vmatmul.mubr.bf16.gmra.mxu0 %v734
        %v1837 = vpop.f32.mrf.mxu0
        %v1838 = vadd.f32 %v1677, %v1837
        %v1839 = vpop.f32.mrf.mxu0
        %v1840 = vpop.f32.mrf.mxu0
        %v1841 = vadd.f32 %v1677, %v1840
        %v1842 = vpop.f32.mrf.mxu0
        %1843 = vmatprep.mubr.bf16.mxu0 %v738
        %1844 = vmatmul.mubr.bf16.gmra.mxu0 %v737
        %v1845 = vpop.f32.mrf.mxu0
        %v1846 = vadd.f32 %v1677, %v1845
        %v1847 = vpop.f32.mrf.mxu0
        %v1848 = vpop.f32.mrf.mxu0
        %v1849 = vadd.f32 %v1677, %v1848
        %v1850 = vpop.f32.mrf.mxu0
        %1851 = vmatprep.mubr.bf16.mxu0 %v741
        %1852 = vmatmul.mubr.bf16.gmra.mxu0 %v740
        %v1853 = vpop.f32.mrf.mxu0
        %v1854 = vadd.f32 %v1677, %v1853
        %v1855 = vpop.f32.mrf.mxu0
        %v1856 = vpop.f32.mrf.mxu0
        %v1857 = vadd.f32 %v1677, %v1856
        %v1858 = vpop.f32.mrf.mxu0
        %1859 = vmatprep.mubr.bf16.mxu0 %v744
        %1860 = vmatmul.mubr.bf16.gmra.mxu0 %v743
        %v1861 = vpop.f32.mrf.mxu0
        %v1862 = vadd.f32 %v1677, %v1861
        %v1863 = vpop.f32.mrf.mxu0
        %v1864 = vpop.f32.mrf.mxu0
        %v1865 = vadd.f32 %v1677, %v1864
        %v1866 = vpop.f32.mrf.mxu0
        %1867 = vmatprep.mubr.bf16.mxu0 %v747
        %1868 = vmatmul.mubr.bf16.gmra.mxu0 %v746
        %v1869 = vpop.f32.mrf.mxu0
        %v1870 = vadd.f32 %v1677, %v1869
        %v1871 = vpop.f32.mrf.mxu0
        %v1872 = vpop.f32.mrf.mxu0
        %v1873 = vadd.f32 %v1677, %v1872
        %v1874 = vpop.f32.mrf.mxu0
        %1875 = vmatprep.mubr.bf16.mxu0 %v750
        %1876 = vmatmul.mubr.bf16.gmra.mxu0 %v749
        %v1877 = vpop.f32.mrf.mxu0
        %v1878 = vadd.f32 %v1677, %v1877
        %v1879 = vpop.f32.mrf.mxu0
        %v1880 = vpop.f32.mrf.mxu0
        %v1881 = vadd.f32 %v1677, %v1880
        %v1882 = vpop.f32.mrf.mxu0
        %1883 = vmatprep.mubr.bf16.mxu0 %v753
        %1884 = vmatmul.mubr.bf16.gmra.mxu0 %v752
        %v1885 = vpop.f32.mrf.mxu0
        %v1886 = vadd.f32 %v1677, %v1885
        %v1887 = vpop.f32.mrf.mxu0
        %v1888 = vpop.f32.mrf.mxu0
        %v1889 = vadd.f32 %v1677, %v1888
        %v1890 = vpop.f32.mrf.mxu0
        %1891 = vmatprep.mubr.bf16.mxu0 %v756
        %1892 = vmatmul.mubr.bf16.gmra.mxu0 %v755
        %v1893 = vpop.f32.mrf.mxu0
        %v1894 = vadd.f32 %v1677, %v1893
        %v1895 = vpop.f32.mrf.mxu0
        %v1896 = vpop.f32.mrf.mxu0
        %v1897 = vadd.f32 %v1677, %v1896
        %v1898 = vpop.f32.mrf.mxu0
        %1899 = vmatprep.mubr.bf16.mxu0 %v759
        %1900 = vmatmul.mubr.bf16.gmra.mxu0 %v758
        %v1901 = vpop.f32.mrf.mxu0
        %v1902 = vadd.f32 %v1677, %v1901
        %v1903 = vpop.f32.mrf.mxu0
        %v1904 = vpop.f32.mrf.mxu0
        %v1905 = vadd.f32 %v1677, %v1904
        %v1906 = vpop.f32.mrf.mxu0
        %1907 = vmatprep.mubr.bf16.mxu0 %v762
        %1908 = vmatmul.mubr.bf16.gmra.mxu0 %v761
        %v1909 = vpop.f32.mrf.mxu0
        %v1910 = vadd.f32 %v1677, %v1909
        %v1911 = vpop.f32.mrf.mxu0
        %v1912 = vpop.f32.mrf.mxu0
        %v1913 = vadd.f32 %v1677, %v1912
        %v1914 = vpop.f32.mrf.mxu0
        %1915 = vmatprep.mubr.bf16.mxu0 %v765
        %1916 = vmatmul.mubr.bf16.gmra.mxu0 %v764
        %v1917 = vpop.f32.mrf.mxu0
        %v1918 = vadd.f32 %v1677, %v1917
        %v1919 = vpop.f32.mrf.mxu0
        %v1920 = vpop.f32.mrf.mxu0
        %v1921 = vadd.f32 %v1677, %v1920
        %v1922 = vpop.f32.mrf.mxu0
        %1923 = vmatprep.mubr.bf16.mxu0 %v768
        %1924 = vmatmul.mubr.bf16.gmra.mxu0 %v767
        %v1925 = vpop.f32.mrf.mxu0
        %v1926 = vadd.f32 %v1677, %v1925
        %v1927 = vpop.f32.mrf.mxu0
        %v1928 = vpop.f32.mrf.mxu0
        %v1929 = vadd.f32 %v1677, %v1928
        %v1930 = vpop.f32.mrf.mxu0
        %1931 = vmatprep.mubr.bf16.mxu0 %v771
        %1932 = vmatmul.mubr.bf16.gmra.mxu0 %v770
        %v1933 = vpop.f32.mrf.mxu0
        %v1934 = vadd.f32 %v1677, %v1933
        %v1935 = vpop.f32.mrf.mxu0
        %v1936 = vpop.f32.mrf.mxu0
        %v1937 = vadd.f32 %v1677, %v1936
        %v1938 = vpop.f32.mrf.mxu0
        %1939 = vmatprep.mubr.bf16.mxu0 %v774
        %1940 = vmatmul.mubr.bf16.gmra.mxu0 %v773
        %v1941 = vpop.f32.mrf.mxu0
        %v1942 = vadd.f32 %v1677, %v1941
        %v1943 = vpop.f32.mrf.mxu0
        %v1944 = vpop.f32.mrf.mxu0
        %v1945 = vadd.f32 %v1677, %v1944
        %v1946 = vpop.f32.mrf.mxu0
        %1947 = vdwg.mxu0
        %1948 = vmatprep.subr.bf16.mxu0 0
        %1949 = vmatpush1.bf16.msra.mxu0 0
        %1950 = vmatprep.subr.bf16.mxu0 0
        %1951 = vmatpush1.bf16.msra.mxu0 0
        %1952 = vmatprep.subr.bf16.mxu0 0
        %1953 = vmatpush1.bf16.msra.mxu0 0
        %1954 = vmatprep.subr.bf16.mxu0 0
        %1955 = vmatpush1.bf16.msra.mxu0 0
        %1956 = vmatprep.subr.bf16.mxu0 0
        %1957 = vmatpush1.bf16.msra.mxu0 0
        %1958 = vmatprep.subr.bf16.mxu0 0
        %1959 = vmatpush1.bf16.msra.mxu0 0
        %1960 = vmatprep.subr.bf16.mxu0 0
        %1961 = vmatpush1.bf16.msra.mxu0 %v1768
        %1962 = vmatprep.subr.bf16.mxu0 0
        %1963 = vmatpush1.bf16.msra.mxu0 %v1767
        %1964 = vmatprep.subr.bf16.mxu0 0
        %1965 = vmatpush2.bf16.msra.mxu0 0
        %1966 = vmatprep.subr.bf16.mxu0 0
        %1967 = vmatpush2.bf16.msra.mxu0 0
        %1968 = vmatprep.subr.bf16.mxu0 0
        %1969 = vmatpush2.bf16.msra.mxu0 0
        %1970 = vmatprep.subr.bf16.mxu0 0
        %1971 = vmatpush2.bf16.msra.mxu0 0
        %1972 = vmatprep.subr.bf16.mxu0 0
        %1973 = vmatpush2.bf16.msra.mxu0 0
        %1974 = vmatprep.subr.bf16.mxu0 0
        %1975 = vmatpush2.bf16.msra.mxu0 0
        %1976 = vmatprep.subr.bf16.mxu0 0
        %1977 = vmatpush2.bf16.msra.mxu0 0
        %1978 = vmatprep.subr.bf16.mxu0 0
        %1979 = vmatpush2.bf16.msra.mxu0 0
        %1980 = vmatprep.mubr.bf16.mxu0 0
        %1981 = vmatmul.mubr.bf16.gmra.mxu0 %v918
        %v1982 = vpop.f32.mrf.mxu0
        %v1983 = vadd.f32 %v1822, %v1982
        %v1984 = vpop.f32.mrf.mxu0
        %v1985 = vpop.f32.mrf.mxu0
        %v1986 = vadd.f32 %v1825, %v1985
        %v1987 = vpop.f32.mrf.mxu0
        %1988 = vmatprep.mubr.bf16.mxu0 0
        %1989 = vmatmul.mubr.bf16.gmra.mxu0 %v921
        %v1990 = vpop.f32.mrf.mxu0
        %v1991 = vadd.f32 %v1830, %v1990
        %v1992 = vpop.f32.mrf.mxu0
        %v1993 = vpop.f32.mrf.mxu0
        %v1994 = vadd.f32 %v1833, %v1993
        %v1995 = vpop.f32.mrf.mxu0
        %1996 = vmatprep.mubr.bf16.mxu0 0
        %1997 = vmatmul.mubr.bf16.gmra.mxu0 %v924
        %v1998 = vpop.f32.mrf.mxu0
        %v1999 = vadd.f32 %v1838, %v1998
        %v2000 = vpop.f32.mrf.mxu0
        %v2001 = vpop.f32.mrf.mxu0
        %v2002 = vadd.f32 %v1841, %v2001
        %v2003 = vpop.f32.mrf.mxu0
        %2004 = vmatprep.mubr.bf16.mxu0 0
        %2005 = vmatmul.mubr.bf16.gmra.mxu0 %v927
        %v2006 = vpop.f32.mrf.mxu0
        %v2007 = vadd.f32 %v1846, %v2006
        %v2008 = vpop.f32.mrf.mxu0
        %v2009 = vpop.f32.mrf.mxu0
        %v2010 = vadd.f32 %v1849, %v2009
        %v2011 = vpop.f32.mrf.mxu0
        %2012 = vmatprep.mubr.bf16.mxu0 0
        %2013 = vmatmul.mubr.bf16.gmra.mxu0 %v930
        %v2014 = vpop.f32.mrf.mxu0
        %v2015 = vadd.f32 %v1854, %v2014
        %v2016 = vpop.f32.mrf.mxu0
        %v2017 = vpop.f32.mrf.mxu0
        %v2018 = vadd.f32 %v1857, %v2017
        %v2019 = vpop.f32.mrf.mxu0
        %2020 = vmatprep.mubr.bf16.mxu0 0
        %2021 = vmatmul.mubr.bf16.gmra.mxu0 %v933
        %v2022 = vpop.f32.mrf.mxu0
        %v2023 = vadd.f32 %v1862, %v2022
        %v2024 = vpop.f32.mrf.mxu0
        %v2025 = vpop.f32.mrf.mxu0
        %v2026 = vadd.f32 %v1865, %v2025
        %v2027 = vpop.f32.mrf.mxu0
        %2028 = vmatprep.mubr.bf16.mxu0 0
        %2029 = vmatmul.mubr.bf16.gmra.mxu0 %v936
        %v2030 = vpop.f32.mrf.mxu0
        %v2031 = vadd.f32 %v1870, %v2030
        %v2032 = vpop.f32.mrf.mxu0
        %v2033 = vpop.f32.mrf.mxu0
        %v2034 = vadd.f32 %v1873, %v2033
        %v2035 = vpop.f32.mrf.mxu0
        %2036 = vmatprep.mubr.bf16.mxu0 0
        %2037 = vmatmul.mubr.bf16.gmra.mxu0 %v939
        %v2038 = vpop.f32.mrf.mxu0
        %v2039 = vadd.f32 %v1878, %v2038
        %v2040 = vpop.f32.mrf.mxu0
        %v2041 = vpop.f32.mrf.mxu0
        %v2042 = vadd.f32 %v1881, %v2041
        %v2043 = vpop.f32.mrf.mxu0
        %2044 = vmatprep.mubr.bf16.mxu0 0
        %2045 = vmatmul.mubr.bf16.gmra.mxu0 %v942
        %v2046 = vpop.f32.mrf.mxu0
        %v2047 = vadd.f32 %v1886, %v2046
        %v2048 = vpop.f32.mrf.mxu0
        %v2049 = vpop.f32.mrf.mxu0
        %v2050 = vadd.f32 %v1889, %v2049
        %v2051 = vpop.f32.mrf.mxu0
        %2052 = vmatprep.mubr.bf16.mxu0 0
        %2053 = vmatmul.mubr.bf16.gmra.mxu0 %v945
        %v2054 = vpop.f32.mrf.mxu0
        %v2055 = vadd.f32 %v1894, %v2054
        %v2056 = vpop.f32.mrf.mxu0
        %v2057 = vpop.f32.mrf.mxu0
        %v2058 = vadd.f32 %v1897, %v2057
        %v2059 = vpop.f32.mrf.mxu0
        %2060 = vmatprep.mubr.bf16.mxu0 0
        %2061 = vmatmul.mubr.bf16.gmra.mxu0 %v948
        %v2062 = vpop.f32.mrf.mxu0
        %v2063 = vadd.f32 %v1902, %v2062
        %v2064 = vpop.f32.mrf.mxu0
        %v2065 = vpop.f32.mrf.mxu0
        %v2066 = vadd.f32 %v1905, %v2065
        %v2067 = vpop.f32.mrf.mxu0
        %2068 = vmatprep.mubr.bf16.mxu0 0
        %2069 = vmatmul.mubr.bf16.gmra.mxu0 %v951
        %v2070 = vpop.f32.mrf.mxu0
        %v2071 = vadd.f32 %v1910, %v2070
        %v2072 = vpop.f32.mrf.mxu0
        %v2073 = vpop.f32.mrf.mxu0
        %v2074 = vadd.f32 %v1913, %v2073
        %v2075 = vpop.f32.mrf.mxu0
        %2076 = vmatprep.mubr.bf16.mxu0 0
        %2077 = vmatmul.mubr.bf16.gmra.mxu0 %v954
        %v2078 = vpop.f32.mrf.mxu0
        %v2079 = vadd.f32 %v1918, %v2078
        %v2080 = vpop.f32.mrf.mxu0
        %v2081 = vpop.f32.mrf.mxu0
        %v2082 = vadd.f32 %v1921, %v2081
        %v2083 = vpop.f32.mrf.mxu0
        %2084 = vmatprep.mubr.bf16.mxu0 0
        %2085 = vmatmul.mubr.bf16.gmra.mxu0 %v957
        %v2086 = vpop.f32.mrf.mxu0
        %v2087 = vadd.f32 %v1926, %v2086
        %v2088 = vpop.f32.mrf.mxu0
        %v2089 = vpop.f32.mrf.mxu0
        %v2090 = vadd.f32 %v1929, %v2089
        %v2091 = vpop.f32.mrf.mxu0
        %2092 = vmatprep.mubr.bf16.mxu0 0
        %2093 = vmatmul.mubr.bf16.gmra.mxu0 %v960
        %v2094 = vpop.f32.mrf.mxu0
        %v2095 = vadd.f32 %v1934, %v2094
        %v2096 = vpop.f32.mrf.mxu0
        %v2097 = vpop.f32.mrf.mxu0
        %v2098 = vadd.f32 %v1937, %v2097
        %v2099 = vpop.f32.mrf.mxu0
        %2100 = vmatprep.mubr.bf16.mxu0 0
        %2101 = vmatmul.mubr.bf16.gmra.mxu0 %v963
        %v2102 = vpop.f32.mrf.mxu0
        %v2103 = vadd.f32 %v1942, %v2102
        %v2104 = vpop.f32.mrf.mxu0
        %v2105 = vpop.f32.mrf.mxu0
        %v2106 = vadd.f32 %v1945, %v2105
        %v2107 = vpop.f32.mrf.mxu0
        %2108 = vdwg.mxu0
        %v2109 = vmax.f32 %v1983, 0.0
        %v2110 = vmax.f32 %v1986, 0.0
        %v2111 = vmax.f32 %v1991, 0.0
        %v2112 = vmax.f32 %v1994, 0.0
        %v2113 = vmax.f32 %v1999, 0.0
        %v2114 = vmax.f32 %v2002, 0.0
        %v2115 = vmax.f32 %v2007, 0.0
        %v2116 = vmax.f32 %v2010, 0.0
        %v2117 = vmax.f32 %v2015, 0.0
        %v2118 = vmax.f32 %v2018, 0.0
        %v2119 = vmax.f32 %v2023, 0.0
        %v2120 = vmax.f32 %v2026, 0.0
        %v2121 = vmax.f32 %v2031, 0.0
        %v2122 = vmax.f32 %v2034, 0.0
        %v2123 = vmax.f32 %v2039, 0.0
        %v2124 = vmax.f32 %v2042, 0.0
        %v2125 = vmax.f32 %v2047, 0.0
        %v2126 = vmax.f32 %v2050, 0.0
        %v2127 = vmax.f32 %v2055, 0.0
        %v2128 = vmax.f32 %v2058, 0.0
        %v2129 = vmax.f32 %v2063, 0.0
        %v2130 = vmax.f32 %v2066, 0.0
        %v2131 = vmax.f32 %v2071, 0.0
        %v2132 = vmax.f32 %v2074, 0.0
        %v2133 = vmax.f32 %v2079, 0.0
        %v2134 = vmax.f32 %v2082, 0.0
        %v2135 = vmax.f32 %v2087, 0.0
        %v2136 = vmax.f32 %v2090, 0.0
        %v2137 = vmax.f32 %v2095, 0.0
        %v2138 = vmax.f32 %v2098, 0.0
        %v2139 = vmax.f32 %v2103, 0.0
        %v2140 = vmax.f32 %v2106, 0.0
        %v2141 = vpack.c.bf16 %v2110, %v2109
        %v2142 = vpack.c.bf16 %v2112, %v2111
        %v2143 = vpack.c.bf16 %v2114, %v2113
        %v2144 = vpack.c.bf16 %v2116, %v2115
        %v2145 = vpack.c.bf16 %v2118, %v2117
        %v2146 = vpack.c.bf16 %v2120, %v2119
        %v2147 = vpack.c.bf16 %v2122, %v2121
        %v2148 = vpack.c.bf16 %v2124, %v2123
        %v2149 = vpack.c.bf16 %v2126, %v2125
        %v2150 = vpack.c.bf16 %v2128, %v2127
        %v2151 = vpack.c.bf16 %v2130, %v2129
        %v2152 = vpack.c.bf16 %v2132, %v2131
        %v2153 = vpack.c.bf16 %v2134, %v2133
        %v2154 = vpack.c.bf16 %v2136, %v2135
        %v2155 = vpack.c.bf16 %v2138, %v2137
        %v2156 = vpack.c.bf16 %v2140, %v2139
        %v2157 = vld [vmem:[%s7] sm:$0xf]
        %v2158 = vld [vmem:[%s7 + $0x4] sm:$0xf]
        %v2159 = vld [vmem:[%s7 + $0x8] sm:$0xf]
        %v2160 = vld [vmem:[%s7 + $0xc] sm:$0xf]
        %v2161 = vld [vmem:[%s8] sm:$0x1]
        %v2163 = vlaneseq
        %v2164 = vshrl.u32 %v2163, 7
        %v2165 = vsub.s32 0, %v2164
        %v2166 = vrot.slane %v2161, %v2165
        %v2172 = vunpack.c.l.b16 %v2157
        %v2173 = vunpack.c.l.b16 %v2158
        %v2174 = vunpack.c.l.b16 %v2159
        %v2175 = vunpack.c.l.b16 %v2160
        %v2176 = vpack.c.b16 %v2173, %v2172
        %v2177 = vpack.c.b16 %v2175, %v2174
        %v2181 = vsel %vm916, %v2141, 0
        %v2184 = vsel %vm916, %v2142, 0
        %v2187 = vsel %vm916, %v2143, 0
        %v2190 = vsel %vm916, %v2144, 0
        %v2193 = vsel %vm916, %v2145, 0
        %v2196 = vsel %vm916, %v2146, 0
        %v2199 = vsel %vm916, %v2147, 0
        %v2202 = vsel %vm916, %v2148, 0
        %v2205 = vsel %vm916, %v2149, 0
        %v2208 = vsel %vm916, %v2150, 0
        %v2211 = vsel %vm916, %v2151, 0
        %v2214 = vsel %vm916, %v2152, 0
        %v2217 = vsel %vm916, %v2153, 0
        %v2220 = vsel %vm916, %v2154, 0
        %v2223 = vsel %vm916, %v2155, 0
        %v2226 = vsel %vm916, %v2156, 0
        %2228 = vmatprep.subr.bf16.mxu0 0
        %2229 = vmatpush1.bf16.msra.mxu0 0
        %2230 = vmatprep.subr.bf16.mxu0 0
        %2231 = vmatpush1.bf16.msra.mxu0 0
        %2232 = vmatprep.subr.bf16.mxu0 0
        %2233 = vmatpush1.bf16.msra.mxu0 0
        %2234 = vmatprep.subr.bf16.mxu0 0
        %2235 = vmatpush1.bf16.msra.mxu0 0
        %2236 = vmatprep.subr.bf16.mxu0 0
        %2237 = vmatpush1.bf16.msra.mxu0 0
        %2238 = vmatprep.subr.bf16.mxu0 0
        %2239 = vmatpush1.bf16.msra.mxu0 0
        %2240 = vmatprep.subr.bf16.mxu0 0
        %2241 = vmatpush1.bf16.msra.mxu0 %v2177
        %2242 = vmatprep.subr.bf16.mxu0 0
        %2243 = vmatpush1.bf16.msra.mxu0 %v2176
        %2244 = vmatprep.subr.bf16.mxu0 0
        %2245 = vmatpush2.bf16.msra.mxu0 0
        %2246 = vmatprep.subr.bf16.mxu0 0
        %2247 = vmatpush2.bf16.msra.mxu0 0
        %2248 = vmatprep.subr.bf16.mxu0 0
        %2249 = vmatpush2.bf16.msra.mxu0 0
        %2250 = vmatprep.subr.bf16.mxu0 0
        %2251 = vmatpush2.bf16.msra.mxu0 0
        %2252 = vmatprep.subr.bf16.mxu0 0
        %2253 = vmatpush2.bf16.msra.mxu0 0
        %2254 = vmatprep.subr.bf16.mxu0 0
        %2255 = vmatpush2.bf16.msra.mxu0 0
        %2256 = vmatprep.subr.bf16.mxu0 0
        %2257 = vmatpush2.bf16.msra.mxu0 0
        %2258 = vmatprep.subr.bf16.mxu0 0
        %2259 = vmatpush2.bf16.msra.mxu0 0
        %2260 = vmatprep.mubr.bf16.mxu0 0
        %2261 = vmatmul.mubr.bf16.gmra.mxu0 %v2181
        %v2262 = vpop.f32.mrf.mxu0
        %v2263 = vadd.f32 %v2166, %v2262
        %v2264 = vpop.f32.mrf.mxu0
        %v2265 = vpop.f32.mrf.mxu0
        %v2266 = vadd.f32 %v2166, %v2265
        %v2267 = vpop.f32.mrf.mxu0
        %2268 = vmatprep.mubr.bf16.mxu0 0
        %2269 = vmatmul.mubr.bf16.gmra.mxu0 %v2184
        %v2270 = vpop.f32.mrf.mxu0
        %v2271 = vadd.f32 %v2166, %v2270
        %v2272 = vpop.f32.mrf.mxu0
        %v2273 = vpop.f32.mrf.mxu0
        %v2274 = vadd.f32 %v2166, %v2273
        %v2275 = vpop.f32.mrf.mxu0
        %2276 = vmatprep.mubr.bf16.mxu0 0
        %2277 = vmatmul.mubr.bf16.gmra.mxu0 %v2187
        %v2278 = vpop.f32.mrf.mxu0
        %v2279 = vadd.f32 %v2166, %v2278
        %v2280 = vpop.f32.mrf.mxu0
        %v2281 = vpop.f32.mrf.mxu0
        %v2282 = vadd.f32 %v2166, %v2281
        %v2283 = vpop.f32.mrf.mxu0
        %2284 = vmatprep.mubr.bf16.mxu0 0
        %2285 = vmatmul.mubr.bf16.gmra.mxu0 %v2190
        %v2286 = vpop.f32.mrf.mxu0
        %v2287 = vadd.f32 %v2166, %v2286
        %v2288 = vpop.f32.mrf.mxu0
        %v2289 = vpop.f32.mrf.mxu0
        %v2290 = vadd.f32 %v2166, %v2289
        %v2291 = vpop.f32.mrf.mxu0
        %2292 = vmatprep.mubr.bf16.mxu0 0
        %2293 = vmatmul.mubr.bf16.gmra.mxu0 %v2193
        %v2294 = vpop.f32.mrf.mxu0
        %v2295 = vadd.f32 %v2166, %v2294
        %v2296 = vpop.f32.mrf.mxu0
        %v2297 = vpop.f32.mrf.mxu0
        %v2298 = vadd.f32 %v2166, %v2297
        %v2299 = vpop.f32.mrf.mxu0
        %2300 = vmatprep.mubr.bf16.mxu0 0
        %2301 = vmatmul.mubr.bf16.gmra.mxu0 %v2196
        %v2302 = vpop.f32.mrf.mxu0
        %v2303 = vadd.f32 %v2166, %v2302
        %v2304 = vpop.f32.mrf.mxu0
        %v2305 = vpop.f32.mrf.mxu0
        %v2306 = vadd.f32 %v2166, %v2305
        %v2307 = vpop.f32.mrf.mxu0
        %2308 = vmatprep.mubr.bf16.mxu0 0
        %2309 = vmatmul.mubr.bf16.gmra.mxu0 %v2199
        %v2310 = vpop.f32.mrf.mxu0
        %v2311 = vadd.f32 %v2166, %v2310
        %v2312 = vpop.f32.mrf.mxu0
        %v2313 = vpop.f32.mrf.mxu0
        %v2314 = vadd.f32 %v2166, %v2313
        %v2315 = vpop.f32.mrf.mxu0
        %2316 = vmatprep.mubr.bf16.mxu0 0
        %2317 = vmatmul.mubr.bf16.gmra.mxu0 %v2202
        %v2318 = vpop.f32.mrf.mxu0
        %v2319 = vadd.f32 %v2166, %v2318
        %v2320 = vpop.f32.mrf.mxu0
        %v2321 = vpop.f32.mrf.mxu0
        %v2322 = vadd.f32 %v2166, %v2321
        %v2323 = vpop.f32.mrf.mxu0
        %2324 = vmatprep.mubr.bf16.mxu0 0
        %2325 = vmatmul.mubr.bf16.gmra.mxu0 %v2205
        %v2326 = vpop.f32.mrf.mxu0
        %v2327 = vadd.f32 %v2166, %v2326
        %v2328 = vpop.f32.mrf.mxu0
        %v2329 = vpop.f32.mrf.mxu0
        %v2330 = vadd.f32 %v2166, %v2329
        %v2331 = vpop.f32.mrf.mxu0
        %2332 = vmatprep.mubr.bf16.mxu0 0
        %2333 = vmatmul.mubr.bf16.gmra.mxu0 %v2208
        %v2334 = vpop.f32.mrf.mxu0
        %v2335 = vadd.f32 %v2166, %v2334
        %v2336 = vpop.f32.mrf.mxu0
        %v2337 = vpop.f32.mrf.mxu0
        %v2338 = vadd.f32 %v2166, %v2337
        %v2339 = vpop.f32.mrf.mxu0
        %2340 = vmatprep.mubr.bf16.mxu0 0
        %2341 = vmatmul.mubr.bf16.gmra.mxu0 %v2211
        %v2342 = vpop.f32.mrf.mxu0
        %v2343 = vadd.f32 %v2166, %v2342
        %v2344 = vpop.f32.mrf.mxu0
        %v2345 = vpop.f32.mrf.mxu0
        %v2346 = vadd.f32 %v2166, %v2345
        %v2347 = vpop.f32.mrf.mxu0
        %2348 = vmatprep.mubr.bf16.mxu0 0
        %2349 = vmatmul.mubr.bf16.gmra.mxu0 %v2214
        %v2350 = vpop.f32.mrf.mxu0
        %v2351 = vadd.f32 %v2166, %v2350
        %v2352 = vpop.f32.mrf.mxu0
        %v2353 = vpop.f32.mrf.mxu0
        %v2354 = vadd.f32 %v2166, %v2353
        %v2355 = vpop.f32.mrf.mxu0
        %2356 = vmatprep.mubr.bf16.mxu0 0
        %2357 = vmatmul.mubr.bf16.gmra.mxu0 %v2217
        %v2358 = vpop.f32.mrf.mxu0
        %v2359 = vadd.f32 %v2166, %v2358
        %v2360 = vpop.f32.mrf.mxu0
        %v2361 = vpop.f32.mrf.mxu0
        %v2362 = vadd.f32 %v2166, %v2361
        %v2363 = vpop.f32.mrf.mxu0
        %2364 = vmatprep.mubr.bf16.mxu0 0
        %2365 = vmatmul.mubr.bf16.gmra.mxu0 %v2220
        %v2366 = vpop.f32.mrf.mxu0
        %v2367 = vadd.f32 %v2166, %v2366
        %v2368 = vpop.f32.mrf.mxu0
        %v2369 = vpop.f32.mrf.mxu0
        %v2370 = vadd.f32 %v2166, %v2369
        %v2371 = vpop.f32.mrf.mxu0
        %2372 = vmatprep.mubr.bf16.mxu0 0
        %2373 = vmatmul.mubr.bf16.gmra.mxu0 %v2223
        %v2374 = vpop.f32.mrf.mxu0
        %v2375 = vadd.f32 %v2166, %v2374
        %v2376 = vpop.f32.mrf.mxu0
        %v2377 = vpop.f32.mrf.mxu0
        %v2378 = vadd.f32 %v2166, %v2377
        %v2379 = vpop.f32.mrf.mxu0
        %2380 = vmatprep.mubr.bf16.mxu0 0
        %2381 = vmatmul.mubr.bf16.gmra.mxu0 %v2226
        %v2382 = vpop.f32.mrf.mxu0
        %v2383 = vadd.f32 %v2166, %v2382
        %v2384 = vpop.f32.mrf.mxu0
        %v2385 = vpop.f32.mrf.mxu0
        %v2386 = vadd.f32 %v2166, %v2385
        %v2387 = vpop.f32.mrf.mxu0
        %2388 = vdwg.mxu0
        %v2389 = vmax.f32 %v2263, 0.0
        %v2390 = vmax.f32 %v2266, 0.0
        %v2391 = vmax.f32 %v2271, 0.0
        %v2392 = vmax.f32 %v2274, 0.0
        %v2393 = vmax.f32 %v2279, 0.0
        %v2394 = vmax.f32 %v2282, 0.0
        %v2395 = vmax.f32 %v2287, 0.0
        %v2396 = vmax.f32 %v2290, 0.0
        %v2397 = vmax.f32 %v2295, 0.0
        %v2398 = vmax.f32 %v2298, 0.0
        %v2399 = vmax.f32 %v2303, 0.0
        %v2400 = vmax.f32 %v2306, 0.0
        %v2401 = vmax.f32 %v2311, 0.0
        %v2402 = vmax.f32 %v2314, 0.0
        %v2403 = vmax.f32 %v2319, 0.0
        %v2404 = vmax.f32 %v2322, 0.0
        %v2405 = vmax.f32 %v2327, 0.0
        %v2406 = vmax.f32 %v2330, 0.0
        %v2407 = vmax.f32 %v2335, 0.0
        %v2408 = vmax.f32 %v2338, 0.0
        %v2409 = vmax.f32 %v2343, 0.0
        %v2410 = vmax.f32 %v2346, 0.0
        %v2411 = vmax.f32 %v2351, 0.0
        %v2412 = vmax.f32 %v2354, 0.0
        %v2413 = vmax.f32 %v2359, 0.0
        %v2414 = vmax.f32 %v2362, 0.0
        %v2415 = vmax.f32 %v2367, 0.0
        %v2416 = vmax.f32 %v2370, 0.0
        %v2417 = vmax.f32 %v2375, 0.0
        %v2418 = vmax.f32 %v2378, 0.0
        %v2419 = vmax.f32 %v2383, 0.0
        %v2420 = vmax.f32 %v2386, 0.0
        %v2421 = vpack.c.bf16 %v2390, %v2389
        %v2422 = vpack.c.bf16 %v2392, %v2391
        %v2423 = vpack.c.bf16 %v2394, %v2393
        %v2424 = vpack.c.bf16 %v2396, %v2395
        %v2425 = vpack.c.bf16 %v2398, %v2397
        %v2426 = vpack.c.bf16 %v2400, %v2399
        %v2427 = vpack.c.bf16 %v2402, %v2401
        %v2428 = vpack.c.bf16 %v2404, %v2403
        %v2429 = vpack.c.bf16 %v2406, %v2405
        %v2430 = vpack.c.bf16 %v2408, %v2407
        %v2431 = vpack.c.bf16 %v2410, %v2409
        %v2432 = vpack.c.bf16 %v2412, %v2411
        %v2433 = vpack.c.bf16 %v2414, %v2413
        %v2434 = vpack.c.bf16 %v2416, %v2415
        %v2435 = vpack.c.bf16 %v2418, %v2417
        %v2436 = vpack.c.bf16 %v2420, %v2419
        %v2437 = vld [vmem:[%s9] sm:$0xf]
        %v2438 = vld [vmem:[%s9 + $0x4] sm:$0xf]
        %v2439 = vld [vmem:[%s10] sm:$0x1]
        %v2441 = vlaneseq
        %v2442 = vshrl.u32 %v2441, 7
        %v2443 = vsub.s32 0, %v2442
        %v2444 = vrot.slane %v2439, %v2443
        %v2448 = vunpack.c.l.b16 %v2437
        %v2449 = vunpack.c.l.b16 %v2438
        %v2450 = vpack.c.b16 %v2449, %v2448
        %vm2452 = vcmask 130048
        %v2454 = vsel %vm2452, %v2421, 0
        %v2457 = vsel %vm2452, %v2422, 0
        %v2460 = vsel %vm2452, %v2423, 0
        %v2463 = vsel %vm2452, %v2424, 0
        %v2466 = vsel %vm2452, %v2425, 0
        %v2469 = vsel %vm2452, %v2426, 0
        %v2472 = vsel %vm2452, %v2427, 0
        %v2475 = vsel %vm2452, %v2428, 0
        %v2478 = vsel %vm2452, %v2429, 0
        %v2481 = vsel %vm2452, %v2430, 0
        %v2484 = vsel %vm2452, %v2431, 0
        %v2487 = vsel %vm2452, %v2432, 0
        %v2490 = vsel %vm2452, %v2433, 0
        %v2493 = vsel %vm2452, %v2434, 0
        %v2496 = vsel %vm2452, %v2435, 0
        %v2499 = vsel %vm2452, %v2436, 0
        %2501 = vmatprep.subr.bf16.mxu0 0
        %2502 = vmatpush1.bf16.msra.mxu0 0
        %2503 = vmatprep.subr.bf16.mxu0 0
        %2504 = vmatpush1.bf16.msra.mxu0 0
        %2505 = vmatprep.subr.bf16.mxu0 0
        %2506 = vmatpush1.bf16.msra.mxu0 0
        %2507 = vmatprep.subr.bf16.mxu0 0
        %2508 = vmatpush1.bf16.msra.mxu0 0
        %2509 = vmatprep.subr.bf16.mxu0 0
        %2510 = vmatpush1.bf16.msra.mxu0 0
        %2511 = vmatprep.subr.bf16.mxu0 0
        %2512 = vmatpush1.bf16.msra.mxu0 0
        %2513 = vmatprep.subr.bf16.mxu0 0
        %2514 = vmatpush1.bf16.msra.mxu0 0
        %2515 = vmatprep.subr.bf16.mxu0 0
        %2516 = vmatpush1.bf16.msra.mxu0 %v2450
        %2517 = vmatprep.subr.bf16.mxu0 0
        %2518 = vmatpush2.bf16.msra.mxu0 0
        %2519 = vmatprep.subr.bf16.mxu0 0
        %2520 = vmatpush2.bf16.msra.mxu0 0
        %2521 = vmatprep.subr.bf16.mxu0 0
        %2522 = vmatpush2.bf16.msra.mxu0 0
        %2523 = vmatprep.subr.bf16.mxu0 0
        %2524 = vmatpush2.bf16.msra.mxu0 0
        %2525 = vmatprep.subr.bf16.mxu0 0
        %2526 = vmatpush2.bf16.msra.mxu0 0
        %2527 = vmatprep.subr.bf16.mxu0 0
        %2528 = vmatpush2.bf16.msra.mxu0 0
        %2529 = vmatprep.subr.bf16.mxu0 0
        %2530 = vmatpush2.bf16.msra.mxu0 0
        %2531 = vmatprep.subr.bf16.mxu0 0
        %2532 = vmatpush2.bf16.msra.mxu0 0
        %2533 = vmatprep.mubr.bf16.mxu0 0
        %2534 = vmatmul.mubr.bf16.gmra.mxu0 %v2454
        %v2535 = vpop.f32.mrf.mxu0
        %v2536 = vadd.f32 %v2444, %v2535
        %v2537 = vpop.f32.mrf.mxu0
        %v2538 = vpop.f32.mrf.mxu0
        %v2539 = vadd.f32 %v2444, %v2538
        %v2540 = vpop.f32.mrf.mxu0
        %2541 = vmatprep.mubr.bf16.mxu0 0
        %2542 = vmatmul.mubr.bf16.gmra.mxu0 %v2457
        %v2543 = vpop.f32.mrf.mxu0
        %v2544 = vadd.f32 %v2444, %v2543
        %v2545 = vpop.f32.mrf.mxu0
        %v2546 = vpop.f32.mrf.mxu0
        %v2547 = vadd.f32 %v2444, %v2546
        %v2548 = vpop.f32.mrf.mxu0
        %2549 = vmatprep.mubr.bf16.mxu0 0
        %2550 = vmatmul.mubr.bf16.gmra.mxu0 %v2460
        %v2551 = vpop.f32.mrf.mxu0
        %v2552 = vadd.f32 %v2444, %v2551
        %v2553 = vpop.f32.mrf.mxu0
        %v2554 = vpop.f32.mrf.mxu0
        %v2555 = vadd.f32 %v2444, %v2554
        %v2556 = vpop.f32.mrf.mxu0
        %2557 = vmatprep.mubr.bf16.mxu0 0
        %2558 = vmatmul.mubr.bf16.gmra.mxu0 %v2463
        %v2559 = vpop.f32.mrf.mxu0
        %v2560 = vadd.f32 %v2444, %v2559
        %v2561 = vpop.f32.mrf.mxu0
        %v2562 = vpop.f32.mrf.mxu0
        %v2563 = vadd.f32 %v2444, %v2562
        %v2564 = vpop.f32.mrf.mxu0
        %2565 = vmatprep.mubr.bf16.mxu0 0
        %2566 = vmatmul.mubr.bf16.gmra.mxu0 %v2466
        %v2567 = vpop.f32.mrf.mxu0
        %v2568 = vadd.f32 %v2444, %v2567
        %v2569 = vpop.f32.mrf.mxu0
        %v2570 = vpop.f32.mrf.mxu0
        %v2571 = vadd.f32 %v2444, %v2570
        %v2572 = vpop.f32.mrf.mxu0
        %2573 = vmatprep.mubr.bf16.mxu0 0
        %2574 = vmatmul.mubr.bf16.gmra.mxu0 %v2469
        %v2575 = vpop.f32.mrf.mxu0
        %v2576 = vadd.f32 %v2444, %v2575
        %v2577 = vpop.f32.mrf.mxu0
        %v2578 = vpop.f32.mrf.mxu0
        %v2579 = vadd.f32 %v2444, %v2578
        %v2580 = vpop.f32.mrf.mxu0
        %2581 = vmatprep.mubr.bf16.mxu0 0
        %2582 = vmatmul.mubr.bf16.gmra.mxu0 %v2472
        %v2583 = vpop.f32.mrf.mxu0
        %v2584 = vadd.f32 %v2444, %v2583
        %v2585 = vpop.f32.mrf.mxu0
        %v2586 = vpop.f32.mrf.mxu0
        %v2587 = vadd.f32 %v2444, %v2586
        %v2588 = vpop.f32.mrf.mxu0
        %2589 = vmatprep.mubr.bf16.mxu0 0
        %2590 = vmatmul.mubr.bf16.gmra.mxu0 %v2475
        %v2591 = vpop.f32.mrf.mxu0
        %v2592 = vadd.f32 %v2444, %v2591
        %v2593 = vpop.f32.mrf.mxu0
        %v2594 = vpop.f32.mrf.mxu0
        %v2595 = vadd.f32 %v2444, %v2594
        %v2596 = vpop.f32.mrf.mxu0
        %2597 = vmatprep.mubr.bf16.mxu0 0
        %2598 = vmatmul.mubr.bf16.gmra.mxu0 %v2478
        %v2599 = vpop.f32.mrf.mxu0
        %v2600 = vadd.f32 %v2444, %v2599
        %v2601 = vpop.f32.mrf.mxu0
        %v2602 = vpop.f32.mrf.mxu0
        %v2603 = vadd.f32 %v2444, %v2602
        %v2604 = vpop.f32.mrf.mxu0
        %2605 = vmatprep.mubr.bf16.mxu0 0
        %2606 = vmatmul.mubr.bf16.gmra.mxu0 %v2481
        %v2607 = vpop.f32.mrf.mxu0
        %v2608 = vadd.f32 %v2444, %v2607
        %v2609 = vpop.f32.mrf.mxu0
        %v2610 = vpop.f32.mrf.mxu0
        %v2611 = vadd.f32 %v2444, %v2610
        %v2612 = vpop.f32.mrf.mxu0
        %2613 = vmatprep.mubr.bf16.mxu0 0
        %2614 = vmatmul.mubr.bf16.gmra.mxu0 %v2484
        %v2615 = vpop.f32.mrf.mxu0
        %v2616 = vadd.f32 %v2444, %v2615
        %v2617 = vpop.f32.mrf.mxu0
        %v2618 = vpop.f32.mrf.mxu0
        %v2619 = vadd.f32 %v2444, %v2618
        %v2620 = vpop.f32.mrf.mxu0
        %2621 = vmatprep.mubr.bf16.mxu0 0
        %2622 = vmatmul.mubr.bf16.gmra.mxu0 %v2487
        %v2623 = vpop.f32.mrf.mxu0
        %v2624 = vadd.f32 %v2444, %v2623
        %v2625 = vpop.f32.mrf.mxu0
        %v2626 = vpop.f32.mrf.mxu0
        %v2627 = vadd.f32 %v2444, %v2626
        %v2628 = vpop.f32.mrf.mxu0
        %2629 = vmatprep.mubr.bf16.mxu0 0
        %2630 = vmatmul.mubr.bf16.gmra.mxu0 %v2490
        %v2631 = vpop.f32.mrf.mxu0
        %v2632 = vadd.f32 %v2444, %v2631
        %v2633 = vpop.f32.mrf.mxu0
        %v2634 = vpop.f32.mrf.mxu0
        %v2635 = vadd.f32 %v2444, %v2634
        %v2636 = vpop.f32.mrf.mxu0
        %2637 = vmatprep.mubr.bf16.mxu0 0
        %2638 = vmatmul.mubr.bf16.gmra.mxu0 %v2493
        %v2639 = vpop.f32.mrf.mxu0
        %v2640 = vadd.f32 %v2444, %v2639
        %v2641 = vpop.f32.mrf.mxu0
        %v2642 = vpop.f32.mrf.mxu0
        %v2643 = vadd.f32 %v2444, %v2642
        %v2644 = vpop.f32.mrf.mxu0
        %2645 = vmatprep.mubr.bf16.mxu0 0
        %2646 = vmatmul.mubr.bf16.gmra.mxu0 %v2496
        %v2647 = vpop.f32.mrf.mxu0
        %v2648 = vadd.f32 %v2444, %v2647
        %v2649 = vpop.f32.mrf.mxu0
        %v2650 = vpop.f32.mrf.mxu0
        %v2651 = vadd.f32 %v2444, %v2650
        %v2652 = vpop.f32.mrf.mxu0
        %2653 = vmatprep.mubr.bf16.mxu0 0
        %2654 = vmatmul.mubr.bf16.gmra.mxu0 %v2499
        %v2655 = vpop.f32.mrf.mxu0
        %v2656 = vadd.f32 %v2444, %v2655
        %v2657 = vpop.f32.mrf.mxu0
        %v2658 = vpop.f32.mrf.mxu0
        %v2659 = vadd.f32 %v2444, %v2658
        %v2660 = vpop.f32.mrf.mxu0
        %2661 = vdwg.mxu0
        %2662 = vxpose.xlu0.b32.start [1/16] %v2536, 128
        %2663 = vxpose.xlu0.b32.cont [2/16] %v2539, 128
        %2664 = vxpose.xlu0.b32.cont [3/16] %v2544, 128
        %2665 = vxpose.xlu0.b32.cont [4/16] %v2547, 128
        %2666 = vxpose.xlu0.b32.cont [5/16] %v2552, 128
        %2667 = vxpose.xlu0.b32.cont [6/16] %v2555, 128
        %2668 = vxpose.xlu0.b32.cont [7/16] %v2560, 128
        %2669 = vxpose.xlu0.b32.cont [8/16] %v2563, 128
        %2670 = vxpose.xlu0.b32.cont [9/16] %v2568, 128
        %2671 = vxpose.xlu0.b32.cont [10/16] %v2571, 128
        %2672 = vxpose.xlu0.b32.cont [11/16] %v2576, 128
        %2673 = vxpose.xlu0.b32.cont [12/16] %v2579, 128
        %2674 = vxpose.xlu0.b32.cont [13/16] %v2584, 128
        %2675 = vxpose.xlu0.b32.cont [14/16] %v2587, 128
        %2676 = vxpose.xlu0.b32.cont [15/16] %v2592, 128
        %2677 = vxpose.xlu0.b32.end [16/16] %v2595, 128
        %v2678 = vpop.trf.xlu0
        %v2679 = vpop.trf.xlu0
        %v2680 = vpop.trf.xlu0
        %v2681 = vpop.trf.xlu0
        %v2682 = vpop.trf.xlu0
        %v2683 = vpop.trf.xlu0
        %v2684 = vpop.trf.xlu0
        %v2685 = vpop.trf.xlu0
        %v2686 = vpop.trf.xlu0
        %v2687 = vpop.trf.xlu0
        %v2688 = vpop.trf.xlu0
        %v2689 = vpop.trf.xlu0
        %v2690 = vpop.trf.xlu0
        %v2691 = vpop.trf.xlu0
        %v2692 = vpop.trf.xlu0
        %v2693 = vpop.trf.xlu0
        %2694 = vxpose.xlu0.b32.start [1/16] %v2600, 128
        %2695 = vxpose.xlu0.b32.cont [2/16] %v2603, 128
        %2696 = vxpose.xlu0.b32.cont [3/16] %v2608, 128
        %2697 = vxpose.xlu0.b32.cont [4/16] %v2611, 128
        %2698 = vxpose.xlu0.b32.cont [5/16] %v2616, 128
        %2699 = vxpose.xlu0.b32.cont [6/16] %v2619, 128
        %2700 = vxpose.xlu0.b32.cont [7/16] %v2624, 128
        %2701 = vxpose.xlu0.b32.cont [8/16] %v2627, 128
        %2702 = vxpose.xlu0.b32.cont [9/16] %v2632, 128
        %2703 = vxpose.xlu0.b32.cont [10/16] %v2635, 128
        %2704 = vxpose.xlu0.b32.cont [11/16] %v2640, 128
        %2705 = vxpose.xlu0.b32.cont [12/16] %v2643, 128
        %2706 = vxpose.xlu0.b32.cont [13/16] %v2648, 128
        %2707 = vxpose.xlu0.b32.cont [14/16] %v2651, 128
        %2708 = vxpose.xlu0.b32.cont [15/16] %v2656, 128
        %2709 = vxpose.xlu0.b32.end [16/16] %v2659, 128
        %v2710 = vpop.trf.xlu0
        %v2711 = vpop.trf.xlu0
        %v2712 = vpop.trf.xlu0
        %v2713 = vpop.trf.xlu0
        %v2714 = vpop.trf.xlu0
        %v2715 = vpop.trf.xlu0
        %v2716 = vpop.trf.xlu0
        %v2717 = vpop.trf.xlu0
        %v2718 = vpop.trf.xlu0
        %v2719 = vpop.trf.xlu0
        %v2720 = vpop.trf.xlu0
        %v2721 = vpop.trf.xlu0
        %v2722 = vpop.trf.xlu0
        %v2723 = vpop.trf.xlu0
        %v2724 = vpop.trf.xlu0
        %v2725 = vpop.trf.xlu0
        %v2728 = vcombine.low %v2678, %v2710
        %v2730 = vunpack.c.l.s4 1983009808
        %v2731 = vunpack.c.0.s8 %v2730
        %v2732 = vlaneseq
        %v2733 = vshrl.u32 %v2732, 7
        %v2734 = vsub.s32 %v2731, %v2733
        %v2735 = vrot.slane %v2728, %v2734
        %2737 = vst [vmem:[%s446] sm:$0xf] %v2735
        %s2738 = sand.u32 %s290, 1
        %s2739 = scalar_lea.sflag [#allocation3], %s2738
        %s2740 = sand.u32 %s290, 1
        %s2741 = smul.addr %s2740, 8
        %s2742 = scalar_lea.vmem [#allocation2], %s2741
        %s2743 = sand.u32 %s318, 1
        %s2744 = scalar_lea.sflag [#allocation5], %s2743
        %s2745 = sand.u32 %s318, 1
        %s2746 = smul.addr %s2745, 4
        %s2747 = scalar_lea.vmem [#allocation4], %s2746
        // Predicated region
        $region65: #{tpu_custom_call.1} parent=63 // pred_check
          %p2748 = pneg %p300
        $region66: #{tpu_custom_call.1} parent=63 // pred_check_branch
          %2750 = sbr.rel (%p2748) target = $region68
        $region67: #{tpu_custom_call.1} parent=63 // pred_region
          %s2751 = smul.u32 2, %s35
          %s2753 = ssub.s32 128, 128
          %2754 = vsyncadd %s2739, %s2753
          %s2755 = smul.addr %s34, 2
          %s2756 = sadd.s32 %s2751, %s2755
          %s2757 = smul.addr %s2756, 64
          %s2758 = scalar_lea.hbm %s11, %s2757
          %s2760 = sshll.u32 %s2742, 4
          %s2761 = int_to_ptr.vmem [resolvable:$true] %s2760
          %2763 = dma.vmem_to_hbm [thread:$0]  %s2761, 128, %s2758, %s2739
        $region68: #{tpu_custom_call.1} parent=63 // pred_fallthru
          _
        // Predicated region
        $region69: #{tpu_custom_call.1} parent=63 // pred_check
          %p2764 = pneg %p328
        $region70: #{tpu_custom_call.1} parent=63 // pred_check_branch
          %2766 = sbr.rel (%p2764) target = $region72
        $region71: #{tpu_custom_call.1} parent=63 // pred_region
          %s2767 = smul.u32 2, %s35
          %s2769 = ssub.s32 64, 64
          %2770 = vsyncadd %s2744, %s2769
          %s2771 = smul.addr %s34, 2
          %s2772 = sadd.s32 %s2767, %s2771
          %s2773 = smul.addr %s2772, 32
          %s2774 = scalar_lea.hbm %s12, %s2773
          %s2776 = sshll.u32 %s2747, 4
          %s2777 = int_to_ptr.vmem [resolvable:$true] %s2776
          %2779 = dma.vmem_to_hbm [thread:$0]  %s2777, 64, %s2774, %s2744
        $region72: #{tpu_custom_call.1} parent=63 // pred_fallthru
          _
      $region64: #{tpu_custom_call.1} parent=5 // pred_fallthru
        _
      %p2780 = scmp.le.s32.totalorder 2, %s25
      // Predicated region
      $region73: #{tpu_custom_call.1} parent=5 // pred_check
        %p2781 = pneg %p2780
      $region74: #{tpu_custom_call.1} parent=5 // pred_check_branch
        %2783 = sbr.rel (%p2781) target = $region76
      $region75: #{tpu_custom_call.1} parent=5 // pred_region
        %s2784 = ssub.s32 %s25, 2
        // Predicated region
        $region77: #{tpu_custom_call.1} parent=75 // pred_check
          %p2785 = pneg %p306
        $region78: #{tpu_custom_call.1} parent=75 // pred_check_branch
          %2787 = sbr.rel (%p2785) target = $region80
        $region79: #{tpu_custom_call.1} parent=75 // pred_region
          %s2788 = sand.u32 %s291, 1
          %s2789 = scalar_lea.sflag [#allocation3], %s2788
          %s2790 = sand.u32 %s291, 1
          %s2791 = smul.addr %s2790, 8
          %s2792 = scalar_lea.vmem [#allocation2], %s2791
          %2793 = dma.done %s2789, 128
        $region80: #{tpu_custom_call.1} parent=75 // pred_fallthru
          _
        // Predicated region
        $region81: #{tpu_custom_call.1} parent=75 // pred_check
          %p2794 = pneg %p334
        $region82: #{tpu_custom_call.1} parent=75 // pred_check_branch
          %2796 = sbr.rel (%p2794) target = $region84
        $region83: #{tpu_custom_call.1} parent=75 // pred_region
          %s2797 = sand.u32 %s319, 1
          %s2798 = scalar_lea.sflag [#allocation5], %s2797
          %s2799 = sand.u32 %s319, 1
          %s2800 = smul.addr %s2799, 4
          %s2801 = scalar_lea.vmem [#allocation4], %s2800
          %2802 = dma.done %s2798, 64
        $region84: #{tpu_custom_call.1} parent=75 // pred_fallthru
          _
      $region76: #{tpu_custom_call.1} parent=5 // pred_fallthru
        _
    $region6: #{tpu_custom_call.1} parent=1 // loop_footer
      %s29 = sadd.s32 1, %s25
    $region7: #{tpu_custom_call.1} parent=1 // loop_footer_branch
      %24 = sbr.rel target = $region3
    $region8: #{tpu_custom_call.1} parent=1 // loop_exit
      _
    %2803 = vsyncpa [#allocation3], 1
    %s2804 = scalar_lea.sflag [#allocation3], 1
    %2805 = vsyncpa %s2804, 1
    %2806 = vsyncpa [#allocation5], 1
    %s2807 = scalar_lea.sflag [#allocation5], 1
    %2808 = vsyncpa %s2807, 1

</llo_original>
